<compile_context>
chip_gen: v7x
topology: tpu7x:2x2x1
jax: 0.10.0
libtpu: 0.0.40
codegen_flags: <defaults>
</compile_context>

<pallas_src>
import functools

import numpy as np
import jax
import jax.numpy as jnp
from jax.experimental import pallas as pl
from jax.experimental.pallas import tpu as pltpu


# --------------------------------------------------------------------------
# In-kernel building blocks (all operate on lane-flat (C, N) activations,
# N = batch_tile * H * W).
# --------------------------------------------------------------------------

def _im2col_pieces(x, mask_ref, W, step):
    """The 9 masked 3x3-tap lane shifts of a lane-flat (Cin, N) activation.

    step=1: standard conv taps.  step=2: `x` is a 2x nearest-upsampled
    half-res map; taps use stride-2 offsets so the conv is evaluated on the
    half-res grid while staying in the full-res lane layout.
    Boundary (and image-boundary, when batch is folded into lanes) masks are
    precomputed in the wrapper, so each tap costs one roll + one multiply.
    """
    N = x.shape[-1]
    pieces = []
    m = 0
    for ky in range(3):
        dy = ky - 1
        for kx in range(3):
            dx = kx - 1
            off = step * (dy * W + dx)
            if off == 0:                       # center tap: no shift, no mask
                pieces.append(x)
                continue
            shifted = pltpu.roll(x, shift=(-off) % N, axis=1)   # x[:, p+off]
            pieces.append(shifted * mask_ref[m:m + 1, :])
            m += 1
    return pieces


def _conv3x3(x, mask_ref, w_pack, W, step=1):
    """3x3 'same' conv: im2col (9 rolls) + ONE bf16 MXU dot, f32 accumulate."""
    patches = jnp.concatenate(_im2col_pieces(x, mask_ref, W, step), axis=0)
    return jnp.dot(w_pack, patches.astype(jnp.bfloat16),
                   preferred_element_type=jnp.float32)


def _blockmax2x2(x, par_ref, W):
    """upsample2(maxpool2(x)) on a lane-flat (C, N) map via parity selects."""
    N = x.shape[-1]
    col_even = par_ref[0:1, :] > 0.5
    row_even = par_ref[1:2, :] > 0.5
    right = pltpu.roll(x, shift=N - 1, axis=1)        # x[:, p+1]
    left = pltpu.roll(x, shift=1, axis=1)             # x[:, p-1]
    m1 = jnp.maximum(x, jnp.where(col_even, right, left))
    down = pltpu.roll(m1, shift=N - W, axis=1)        # m1[:, p+W]
    up = pltpu.roll(m1, shift=W, axis=1)              # m1[:, p-W]
    return jnp.maximum(m1, jnp.where(row_even, down, up))


def _unet_fused_kernel(x_ref, m1_ref, m2_ref, par_ref,
                       w1_ref, b1_ref, w2_ref, b2_ref,
                       w3_ref, b3_ref, w4_ref, b4_ref,
                       o_ref, *, W):
    """Whole UNet forward for one batch group; activations never leave VMEM."""
    x = x_ref[0]                                                 # (Cin, N)

    # enc1 (full res) + ReLU
    e1 = jnp.maximum(_conv3x3(x, m1_ref, w1_ref[...], W)
                     + b1_ref[...], 0.0)                         # (C1, N)

    # maxpool -> enc2 -> nearest-upsample, all fused in the lane-flat layout.
    u1 = _blockmax2x2(e1, par_ref, W)                 # upsample(maxpool(e1))
    e2u = jnp.maximum(_conv3x3(u1, m2_ref, w2_ref[...], W, step=2)
                      + b2_ref[...], 0.0)             # = upsample(enc2(...))

    # dec1 with skip: ONE merged dot, K = 9*C2 + 9*C1 (no feature-map concat).
    pieces = (_im2col_pieces(e2u, m1_ref, W, 1)
              + _im2col_pieces(e1, m1_ref, W, 1))
    patches = jnp.concatenate(pieces, axis=0)                    # (216, N)
    d1 = jnp.maximum(jnp.dot(w3_ref[...], patches.astype(jnp.bfloat16),
                             preferred_element_type=jnp.float32)
                     + b3_ref[...], 0.0)                         # (C1, N)

    # 1-channel head; NeSSDetector's .clamp(min=0.0) fused as the final ReLU.
    # TODO(synk): biases could be folded into the packed weights (ones row in
    #             patches) to drop these four broadcast adds entirely.
    head = _conv3x3(d1, m1_ref, w4_ref[...], W) + b4_ref[...]    # (1, N)
    o_ref[0] = jnp.maximum(head, 0.0).astype(o_ref.dtype)


# --------------------------------------------------------------------------
# Wrapper: hoisted mask precompute + weight packing + pallas_call.
# --------------------------------------------------------------------------

def _pack_w(w):
    """(3,3,Cin,Cout) conv weights -> bf16 (Cout, 9*Cin) for the im2col dot."""
    kh, kw, cin, cout = w.shape
    return jnp.transpose(w.reshape(kh * kw * cin, cout)).astype(jnp.bfloat16)


def _col(b):
    return b.reshape(-1, 1).astype(jnp.float32)   # (Cout,1), broadcasts lanes


def _tap_masks(H, W, bt, step):
    """Hoisted boundary masks for the 8 non-center taps, shape (8, bt*H*W)."""
    HW = H * W
    idx = np.arange(bt * HW, dtype=np.int32) % HW    # per-image lane position
    ry = (idx // W) // step
    rx = (idx % W) // step
    Hh, Wh = H // step, W // step
    rows = []
    for ky in range(3):
        dy = ky - 1
        for kx in range(3):
            dx = kx - 1
            if dy == 0 and dx == 0:
                continue
            rows.append((ry + dy >= 0) & (ry + dy < Hh)
                        & (rx + dx >= 0) & (rx + dx < Wh))
    return jnp.asarray(np.stack(rows, axis=0).astype(np.float32))


def _parity_masks(H, W, bt):
    """col-even / row-even masks (per image) for the fused pool+upsample."""
    HW = H * W
    idx = np.arange(bt * HW, dtype=np.int32) % HW
    par = np.stack([(idx % W) % 2 == 0, (idx // W) % 2 == 0], axis=0)
    return jnp.asarray(par.astype(np.float32))


def ness_detector_forward(params, image_nchw, batch_tile=None):
    """NeSSDetector.forward: neur_beta_eme_model(image)[-1].clamp(min=0.0)."""
    B, Cin, H, W = image_nchw.shape
    assert H % 2 == 0 and W % 2 == 0, "even H, W required (2x2 pool/upsample)"
    HW = H * W

    if batch_tile is None:
        # Fold batch into the lane dim (wider N, fewer grid steps) but keep the
        # grid length >= 2 when possible so v7x's second TensorCore gets work.
        batch_tile = B // 2 if (B % 2 == 0 and B >= 2) else 1
    bt = batch_tile
    assert B % bt == 0
    n_lanes = bt * HW
    assert n_lanes % 128 == 0, "lane width must be a multiple of 128"

    # NCHW -> (B//bt, C, bt*HW): channels on sublanes, (image, pixel) on lanes.
    x = image_nchw.reshape(B // bt, bt, Cin, HW).transpose(0, 2, 1, 3)
    x = x.reshape(B // bt, Cin, n_lanes).astype(jnp.float32)

    # Pad input channels once (top of the network only) to a sublane multiple.
    cpad = -(-Cin // 8) * 8
    (w1, b1) = params["enc1"]
    (w2, b2) = params["enc2"]
    (w3a, w3b, b3) = params["dec1"]
    (w4, b4) = params["out"]
    if cpad != Cin:
        x = jnp.pad(x, ((0, 0), (0, cpad - Cin), (0, 0)))
        w1 = jnp.pad(w1, ((0, 0), (0, 0), (0, cpad - Cin), (0, 0)))

    # Hoisted constants: tap/parity masks + bf16-packed weights + f32 biases.
    m1 = _tap_masks(H, W, bt, step=1)                           # (8, N)
    m2 = _tap_masks(H, W, bt, step=2)                           # (8, N)
    par = _parity_masks(H, W, bt)                               # (2, N)
    w3 = jnp.concatenate([_pack_w(w3a), _pack_w(w3b)], axis=1)  # (C1, 216)
    consts = [m1, m2, par,
              _pack_w(w1), _col(b1),
              _pack_w(w2), _col(b2),
              w3, _col(b3),
              _pack_w(w4), _col(b4)]

    kern = functools.partial(_unet_fused_kernel, W=W)
    out_flat = pl.pallas_call(
        kern,
        out_shape=jax.ShapeDtypeStruct((B // bt, 1, n_lanes), jnp.float32),
        grid=(B // bt,),
        in_specs=([pl.BlockSpec((1, cpad, n_lanes), lambda i: (i, 0, 0))]
                  + [pl.BlockSpec(c.shape, lambda i: (0, 0)) for c in consts]),
        out_specs=pl.BlockSpec((1, 1, n_lanes), lambda i: (i, 0, 0)),
        compiler_params=pltpu.CompilerParams(
            dimension_semantics=("parallel",)),   # shard groups over TCs (v7x)
    )(x, *consts)

    # (B//bt, 1, bt*HW) -> (B, 1, H, W); channel dim is 1 so this is cheap.
    out = out_flat.reshape(B // bt, 1, bt, HW).transpose(0, 2, 1, 3)
    return out.reshape(B, 1, H, W)


# --------------------------------------------------------------------------
# Synthetic UNet parameters (deterministic) + pure-XLA reference for checking.
# --------------------------------------------------------------------------

def init_unet_params(key, c_in, c_base=8):
    ks = jax.random.split(key, 5)

    def wb(k, cin, cout):
        kw, kb = jax.random.split(k)
        w = 0.1 * jax.random.normal(kw, (3, 3, cin, cout), jnp.float32)
        b = 0.1 * jax.random.normal(kb, (cout,), jnp.float32)
        return w, b

    w3a, _ = wb(ks[2], 2 * c_base, c_base)        # dec1 half applied to up(e2)
    w3b, b3 = wb(ks[3], c_base, c_base)           # dec1 half applied to skip e1
    return {
        "enc1": wb(ks[0], c_in, c_base),          # C_in -> 8
        "enc2": wb(ks[1], c_base, 2 * c_base),    # 8    -> 16
        "dec1": (w3a, w3b, b3),                   # 16+8 -> 8 (split, no concat)
        "out": wb(ks[4], c_base, 1),              # 8    -> 1
    }


def _conv3x3_xla(x_nchw, w_hwio, b=None, mxu_dtype=jnp.float32):
    y = jax.lax.conv_general_dilated(
        x_nchw.astype(mxu_dtype), w_hwio.astype(mxu_dtype),
        window_strides=(1, 1), padding=((1, 1), (1, 1)),
        dimension_numbers=("NCHW", "HWIO", "NCHW"),
        preferred_element_type=jnp.float32)
    if b is not None:
        y = y + b[None, :, None, None]
    return y


def _ref_forward(params, image, mxu_dtype=jnp.float32):
    """Pure-XLA reference of the same synthetic UNet (validation only)."""
    (w1, b1) = params["enc1"]
    (w2, b2) = params["enc2"]
    (w3a, w3b, b3) = params["dec1"]
    (w4, b4) = params["out"]
    conv = functools.partial(_conv3x3_xla, mxu_dtype=mxu_dtype)
    e1 = jnp.maximum(conv(image, w1, b1), 0.0)
    B, C1, H, W = e1.shape
    p1 = e1.reshape(B, C1, H // 2, 2, W // 2, 2).max(axis=(3, 5))
    e2 = jnp.maximum(conv(p1, w2, b2), 0.0)
    u2 = jnp.repeat(jnp.repeat(e2, 2, axis=2), 2, axis=3)
    d1 = jnp.maximum(conv(u2, w3a) + conv(e1, w3b)
                     + b3[None, :, None, None], 0.0)
    return jnp.maximum(conv(d1, w4, b4), 0.0)


if __name__ == "__main__":
    key = jax.random.PRNGKey(0)
    k_img, k_par = jax.random.split(key)

    B, C, H, W = 2, 4, 16, 16
    image = jax.random.normal(k_img, (B, C, H, W), jnp.float32)   # NCHW
    params = init_unet_params(k_par, c_in=C, c_base=8)

    fwd = jax.jit(ness_detector_forward)
    out = jax.block_until_ready(fwd(params, image))

    assert out.shape == (B, 1, H, W), out.shape
    assert out.dtype == jnp.float32
    assert bool(jnp.all(out >= 0.0))               # clamp(min=0.0) respected

    # Validate against an XLA reference with matched bf16 MXU operands (tight)
    # and against the pure-f32 reference (loose bound on bf16 drift).
    ref16 = jax.block_until_ready(_ref_forward(params, image, jnp.bfloat16))
    err16 = float(jnp.max(jnp.abs(out - ref16)))
    assert err16 < 1e-2, f"mismatch vs bf16-matched XLA reference: {err16}"
    ref32 = jax.block_until_ready(_ref_forward(params, image))
    err32 = float(jnp.max(jnp.abs(out - ref32)))
    assert err32 < 5e-2, f"drift vs f32 XLA reference: {err32}"

    # Exercise the batch-in-lanes path: B=4 -> batch_tile=2, grid=2, N=512.
    image4 = jax.random.normal(jax.random.PRNGKey(1), (4, C, H, W), jnp.float32)
    out4 = jax.block_until_ready(jax.jit(ness_detector_forward)(params, image4))
    ref4 = jax.block_until_ready(_ref_forward(params, image4, jnp.bfloat16))
    err4 = float(jnp.max(jnp.abs(out4 - ref4)))
    assert bool(jnp.all(out4 >= 0.0))
    assert err4 < 1e-2, f"batch-in-lanes mismatch vs XLA reference: {err4}"

    print("KERNEL_OK")
</pallas_src>

<mosaic_0001>
module attributes {stable_mosaic.version = 11 : i64} {
  func.func @_unet_fused_kernel(%arg0: i32, %arg1: memref<1x8x256xf32, #tpu.memory_space<vmem>>, %arg2: memref<8x256xf32, #tpu.memory_space<vmem>>, %arg3: memref<8x256xf32, #tpu.memory_space<vmem>>, %arg4: memref<2x256xf32, #tpu.memory_space<vmem>>, %arg5: memref<8x72xbf16, #tpu.memory_space<vmem>>, %arg6: memref<8x1xf32, #tpu.memory_space<vmem>>, %arg7: memref<16x72xbf16, #tpu.memory_space<vmem>>, %arg8: memref<16x1xf32, #tpu.memory_space<vmem>>, %arg9: memref<8x216xbf16, #tpu.memory_space<vmem>>, %arg10: memref<8x1xf32, #tpu.memory_space<vmem>>, %arg11: memref<1x72xbf16, #tpu.memory_space<vmem>>, %arg12: memref<1x1xf32, #tpu.memory_space<vmem>>, %arg13: memref<1x1x256xf32, #tpu.memory_space<vmem>>) attributes {dimension_semantics = [#tpu.dimension_semantics<parallel>], iteration_bounds = array<i64: 2>, scalar_prefetch = 0 : i64, scratch_operands = 0 : i64, tpu.core_type = #tpu.core_type<tc>, window_params = [{transform_indices = @transform_0, window_bounds = array<i64: 1, 8, 256>}, {pipeline_mode = #tpu.pipeline_mode<synchronous>, transform_indices = @transform_1, window_bounds = array<i64: 8, 256>}, {pipeline_mode = #tpu.pipeline_mode<synchronous>, transform_indices = @transform_2, window_bounds = array<i64: 8, 256>}, {pipeline_mode = #tpu.pipeline_mode<synchronous>, transform_indices = @transform_3, window_bounds = array<i64: 2, 256>}, {pipeline_mode = #tpu.pipeline_mode<synchronous>, transform_indices = @transform_4, window_bounds = array<i64: 8, 72>}, {pipeline_mode = #tpu.pipeline_mode<synchronous>, transform_indices = @transform_5, window_bounds = array<i64: 8, 1>}, {pipeline_mode = #tpu.pipeline_mode<synchronous>, transform_indices = @transform_6, window_bounds = array<i64: 16, 72>}, {pipeline_mode = #tpu.pipeline_mode<synchronous>, transform_indices = @transform_7, window_bounds = array<i64: 16, 1>}, {pipeline_mode = #tpu.pipeline_mode<synchronous>, transform_indices = @transform_8, window_bounds = array<i64: 8, 216>}, {pipeline_mode = #tpu.pipeline_mode<synchronous>, transform_indices = @transform_9, window_bounds = array<i64: 8, 1>}, {pipeline_mode = #tpu.pipeline_mode<synchronous>, transform_indices = @transform_10, window_bounds = array<i64: 1, 72>}, {pipeline_mode = #tpu.pipeline_mode<synchronous>, transform_indices = @transform_11, window_bounds = array<i64: 1, 1>}, {transform_indices = @transform_12, window_bounds = array<i64: 1, 1, 256>}]} {
    %c0 = arith.constant 0 : index
    %c0_0 = arith.constant 0 : index
    %c0_1 = arith.constant 0 : index
    %0 = vector.load %arg1[%c0, %c0_0, %c0_1] : memref<1x8x256xf32, #tpu.memory_space<vmem>>, vector<1x8x256xf32>
    %1 = vector.shape_cast %0 : vector<1x8x256xf32> to vector<8x256xf32>
    %c0_2 = arith.constant 0 : index
    %c0_3 = arith.constant 0 : index
    %2 = vector.load %arg5[%c0_2, %c0_3] : memref<8x72xbf16, #tpu.memory_space<vmem>>, vector<8x72xbf16>
    %c17_i32 = arith.constant 17 : i32
    %3 = tpu.dynamic_rotate %1 by %c17_i32 dim 1 : vector<8x256xf32>, i32 -> vector<8x256xf32>
    %c0_4 = arith.constant 0 : index
    %c0_5 = arith.constant 0 : index
    %4 = vector.load %arg2[%c0_4, %c0_5] : memref<8x256xf32, #tpu.memory_space<vmem>>, vector<1x256xf32>
    %5 = vector.broadcast %4 : vector<1x256xf32> to vector<8x256xf32>
    %6 = arith.mulf %3, %5 : vector<8x256xf32>
    %c16_i32 = arith.constant 16 : i32
    %7 = tpu.dynamic_rotate %1 by %c16_i32 dim 1 : vector<8x256xf32>, i32 -> vector<8x256xf32>
    %c1 = arith.constant 1 : index
    %c0_6 = arith.constant 0 : index
    %8 = vector.load %arg2[%c1, %c0_6] : memref<8x256xf32, #tpu.memory_space<vmem>>, vector<1x256xf32>
    %9 = vector.broadcast %8 : vector<1x256xf32> to vector<8x256xf32>
    %10 = arith.mulf %7, %9 : vector<8x256xf32>
    %c15_i32 = arith.constant 15 : i32
    %11 = tpu.dynamic_rotate %1 by %c15_i32 dim 1 : vector<8x256xf32>, i32 -> vector<8x256xf32>
    %c2 = arith.constant 2 : index
    %c0_7 = arith.constant 0 : index
    %12 = vector.load %arg2[%c2, %c0_7] : memref<8x256xf32, #tpu.memory_space<vmem>>, vector<1x256xf32>
    %13 = vector.broadcast %12 : vector<1x256xf32> to vector<8x256xf32>
    %14 = arith.mulf %11, %13 : vector<8x256xf32>
    %c1_i32 = arith.constant 1 : i32
    %15 = tpu.dynamic_rotate %1 by %c1_i32 dim 1 : vector<8x256xf32>, i32 -> vector<8x256xf32>
    %c3 = arith.constant 3 : index
    %c0_8 = arith.constant 0 : index
    %16 = vector.load %arg2[%c3, %c0_8] : memref<8x256xf32, #tpu.memory_space<vmem>>, vector<1x256xf32>
    %17 = vector.broadcast %16 : vector<1x256xf32> to vector<8x256xf32>
    %18 = arith.mulf %15, %17 : vector<8x256xf32>
    %c255_i32 = arith.constant 255 : i32
    %19 = tpu.dynamic_rotate %1 by %c255_i32 dim 1 : vector<8x256xf32>, i32 -> vector<8x256xf32>
    %c4 = arith.constant 4 : index
    %c0_9 = arith.constant 0 : index
    %20 = vector.load %arg2[%c4, %c0_9] : memref<8x256xf32, #tpu.memory_space<vmem>>, vector<1x256xf32>
    %21 = vector.broadcast %20 : vector<1x256xf32> to vector<8x256xf32>
    %22 = arith.mulf %19, %21 : vector<8x256xf32>
    %c241_i32 = arith.constant 241 : i32
    %23 = tpu.dynamic_rotate %1 by %c241_i32 dim 1 : vector<8x256xf32>, i32 -> vector<8x256xf32>
    %c5 = arith.constant 5 : index
    %c0_10 = arith.constant 0 : index
    %24 = vector.load %arg2[%c5, %c0_10] : memref<8x256xf32, #tpu.memory_space<vmem>>, vector<1x256xf32>
    %25 = vector.broadcast %24 : vector<1x256xf32> to vector<8x256xf32>
    %26 = arith.mulf %23, %25 : vector<8x256xf32>
    %c240_i32 = arith.constant 240 : i32
    %27 = tpu.dynamic_rotate %1 by %c240_i32 dim 1 : vector<8x256xf32>, i32 -> vector<8x256xf32>
    %c6 = arith.constant 6 : index
    %c0_11 = arith.constant 0 : index
    %28 = vector.load %arg2[%c6, %c0_11] : memref<8x256xf32, #tpu.memory_space<vmem>>, vector<1x256xf32>
    %29 = vector.broadcast %28 : vector<1x256xf32> to vector<8x256xf32>
    %30 = arith.mulf %27, %29 : vector<8x256xf32>
    %c239_i32 = arith.constant 239 : i32
    %31 = tpu.dynamic_rotate %1 by %c239_i32 dim 1 : vector<8x256xf32>, i32 -> vector<8x256xf32>
    %c7 = arith.constant 7 : index
    %c0_12 = arith.constant 0 : index
    %32 = vector.load %arg2[%c7, %c0_12] : memref<8x256xf32, #tpu.memory_space<vmem>>, vector<1x256xf32>
    %33 = vector.broadcast %32 : vector<1x256xf32> to vector<8x256xf32>
    %34 = arith.mulf %31, %33 : vector<8x256xf32>
    %35 = tpu.concatenate %6, %10, %14, %18, %1, %22, %26, %30, %34 in 0 : vector<8x256xf32>, vector<8x256xf32>, vector<8x256xf32>, vector<8x256xf32>, vector<8x256xf32>, vector<8x256xf32>, vector<8x256xf32>, vector<8x256xf32>, vector<8x256xf32> -> vector<72x256xf32>
    %36 = arith.truncf %35 : vector<72x256xf32> to vector<72x256xbf16>
    %cst = arith.constant dense<0.000000e+00> : vector<8x256xf32>
    %37 = tpu.matmul %2, %36, %cst {dimension_numbers = #tpu.dot_dimension_numbers<[1], [0], [0], [1], [0, 0, 1, 1], [], []>} : vector<8x72xbf16>, vector<72x256xbf16>, vector<8x256xf32> -> vector<8x256xf32>
    %c0_13 = arith.constant 0 : index
    %c0_14 = arith.constant 0 : index
    %38 = vector.load %arg6[%c0_13, %c0_14] : memref<8x1xf32, #tpu.memory_space<vmem>>, vector<8x1xf32>
    %39 = vector.broadcast %38 : vector<8x1xf32> to vector<8x256xf32>
    %40 = arith.addf %37, %39 : vector<8x256xf32>
    %cst_15 = arith.constant 0.000000e+00 : f32
    %41 = vector.broadcast %cst_15 : f32 to vector<8x256xf32>
    %42 = arith.maximumf %40, %41 : vector<8x256xf32>
    %c0_16 = arith.constant 0 : index
    %c0_17 = arith.constant 0 : index
    %43 = vector.load %arg4[%c0_16, %c0_17] : memref<2x256xf32, #tpu.memory_space<vmem>>, vector<1x256xf32>
    %cst_18 = arith.constant 5.000000e-01 : f32
    %44 = vector.broadcast %cst_18 : f32 to vector<1x256xf32>
    %45 = arith.cmpf ogt, %43, %44 : vector<1x256xf32>
    %c1_19 = arith.constant 1 : index
    %c0_20 = arith.constant 0 : index
    %46 = vector.load %arg4[%c1_19, %c0_20] : memref<2x256xf32, #tpu.memory_space<vmem>>, vector<1x256xf32>
    %cst_21 = arith.constant 5.000000e-01 : f32
    %47 = vector.broadcast %cst_21 : f32 to vector<1x256xf32>
    %48 = arith.cmpf ogt, %46, %47 : vector<1x256xf32>
    %c255_i32_22 = arith.constant 255 : i32
    %49 = tpu.dynamic_rotate %42 by %c255_i32_22 dim 1 : vector<8x256xf32>, i32 -> vector<8x256xf32>
    %c1_i32_23 = arith.constant 1 : i32
    %50 = tpu.dynamic_rotate %42 by %c1_i32_23 dim 1 : vector<8x256xf32>, i32 -> vector<8x256xf32>
    %51 = vector.shape_cast %45 : vector<1x256xi1> to vector<1x256xi1>
    %52 = vector.broadcast %51 : vector<1x256xi1> to vector<8x256xi1>
    %53 = arith.select %52, %49, %50 : vector<8x256xi1>, vector<8x256xf32>
    %54 = arith.maximumf %42, %53 : vector<8x256xf32>
    %c240_i32_24 = arith.constant 240 : i32
    %55 = tpu.dynamic_rotate %54 by %c240_i32_24 dim 1 : vector<8x256xf32>, i32 -> vector<8x256xf32>
    %c16_i32_25 = arith.constant 16 : i32
    %56 = tpu.dynamic_rotate %54 by %c16_i32_25 dim 1 : vector<8x256xf32>, i32 -> vector<8x256xf32>
    %57 = vector.shape_cast %48 : vector<1x256xi1> to vector<1x256xi1>
    %58 = vector.broadcast %57 : vector<1x256xi1> to vector<8x256xi1>
    %59 = arith.select %58, %55, %56 : vector<8x256xi1>, vector<8x256xf32>
    %60 = arith.maximumf %54, %59 : vector<8x256xf32>
    %c0_26 = arith.constant 0 : index
    %c0_27 = arith.constant 0 : index
    %61 = vector.load %arg7[%c0_26, %c0_27] : memref<16x72xbf16, #tpu.memory_space<vmem>>, vector<16x72xbf16>
    %c34_i32 = arith.constant 34 : i32
    %62 = tpu.dynamic_rotate %60 by %c34_i32 dim 1 : vector<8x256xf32>, i32 -> vector<8x256xf32>
    %c0_28 = arith.constant 0 : index
    %c0_29 = arith.constant 0 : index
    %63 = vector.load %arg3[%c0_28, %c0_29] : memref<8x256xf32, #tpu.memory_space<vmem>>, vector<1x256xf32>
    %64 = vector.broadcast %63 : vector<1x256xf32> to vector<8x256xf32>
    %65 = arith.mulf %62, %64 : vector<8x256xf32>
    %c32_i32 = arith.constant 32 : i32
    %66 = tpu.dynamic_rotate %60 by %c32_i32 dim 1 : vector<8x256xf32>, i32 -> vector<8x256xf32>
    %c1_30 = arith.constant 1 : index
    %c0_31 = arith.constant 0 : index
    %67 = vector.load %arg3[%c1_30, %c0_31] : memref<8x256xf32, #tpu.memory_space<vmem>>, vector<1x256xf32>
    %68 = vector.broadcast %67 : vector<1x256xf32> to vector<8x256xf32>
    %69 = arith.mulf %66, %68 : vector<8x256xf32>
    %c30_i32 = arith.constant 30 : i32
    %70 = tpu.dynamic_rotate %60 by %c30_i32 dim 1 : vector<8x256xf32>, i32 -> vector<8x256xf32>
    %c2_32 = arith.constant 2 : index
    %c0_33 = arith.constant 0 : index
    %71 = vector.load %arg3[%c2_32, %c0_33] : memref<8x256xf32, #tpu.memory_space<vmem>>, vector<1x256xf32>
    %72 = vector.broadcast %71 : vector<1x256xf32> to vector<8x256xf32>
    %73 = arith.mulf %70, %72 : vector<8x256xf32>
    %c2_i32 = arith.constant 2 : i32
    %74 = tpu.dynamic_rotate %60 by %c2_i32 dim 1 : vector<8x256xf32>, i32 -> vector<8x256xf32>
    %c3_34 = arith.constant 3 : index
    %c0_35 = arith.constant 0 : index
    %75 = vector.load %arg3[%c3_34, %c0_35] : memref<8x256xf32, #tpu.memory_space<vmem>>, vector<1x256xf32>
    %76 = vector.broadcast %75 : vector<1x256xf32> to vector<8x256xf32>
    %77 = arith.mulf %74, %76 : vector<8x256xf32>
    %c254_i32 = arith.constant 254 : i32
    %78 = tpu.dynamic_rotate %60 by %c254_i32 dim 1 : vector<8x256xf32>, i32 -> vector<8x256xf32>
    %c4_36 = arith.constant 4 : index
    %c0_37 = arith.constant 0 : index
    %79 = vector.load %arg3[%c4_36, %c0_37] : memref<8x256xf32, #tpu.memory_space<vmem>>, vector<1x256xf32>
    %80 = vector.broadcast %79 : vector<1x256xf32> to vector<8x256xf32>
    %81 = arith.mulf %78, %80 : vector<8x256xf32>
    %c226_i32 = arith.constant 226 : i32
    %82 = tpu.dynamic_rotate %60 by %c226_i32 dim 1 : vector<8x256xf32>, i32 -> vector<8x256xf32>
    %c5_38 = arith.constant 5 : index
    %c0_39 = arith.constant 0 : index
    %83 = vector.load %arg3[%c5_38, %c0_39] : memref<8x256xf32, #tpu.memory_space<vmem>>, vector<1x256xf32>
    %84 = vector.broadcast %83 : vector<1x256xf32> to vector<8x256xf32>
    %85 = arith.mulf %82, %84 : vector<8x256xf32>
    %c224_i32 = arith.constant 224 : i32
    %86 = tpu.dynamic_rotate %60 by %c224_i32 dim 1 : vector<8x256xf32>, i32 -> vector<8x256xf32>
    %c6_40 = arith.constant 6 : index
    %c0_41 = arith.constant 0 : index
    %87 = vector.load %arg3[%c6_40, %c0_41] : memref<8x256xf32, #tpu.memory_space<vmem>>, vector<1x256xf32>
    %88 = vector.broadcast %87 : vector<1x256xf32> to vector<8x256xf32>
    %89 = arith.mulf %86, %88 : vector<8x256xf32>
    %c222_i32 = arith.constant 222 : i32
    %90 = tpu.dynamic_rotate %60 by %c222_i32 dim 1 : vector<8x256xf32>, i32 -> vector<8x256xf32>
    %c7_42 = arith.constant 7 : index
    %c0_43 = arith.constant 0 : index
    %91 = vector.load %arg3[%c7_42, %c0_43] : memref<8x256xf32, #tpu.memory_space<vmem>>, vector<1x256xf32>
    %92 = vector.broadcast %91 : vector<1x256xf32> to vector<8x256xf32>
    %93 = arith.mulf %90, %92 : vector<8x256xf32>
    %94 = tpu.concatenate %65, %69, %73, %77, %60, %81, %85, %89, %93 in 0 : vector<8x256xf32>, vector<8x256xf32>, vector<8x256xf32>, vector<8x256xf32>, vector<8x256xf32>, vector<8x256xf32>, vector<8x256xf32>, vector<8x256xf32>, vector<8x256xf32> -> vector<72x256xf32>
    %95 = arith.truncf %94 : vector<72x256xf32> to vector<72x256xbf16>
    %cst_44 = arith.constant dense<0.000000e+00> : vector<16x256xf32>
    %96 = tpu.matmul %61, %95, %cst_44 {dimension_numbers = #tpu.dot_dimension_numbers<[1], [0], [0], [1], [0, 0, 1, 1], [], []>} : vector<16x72xbf16>, vector<72x256xbf16>, vector<16x256xf32> -> vector<16x256xf32>
    %c0_45 = arith.constant 0 : index
    %c0_46 = arith.constant 0 : index
    %97 = vector.load %arg8[%c0_45, %c0_46] : memref<16x1xf32, #tpu.memory_space<vmem>>, vector<16x1xf32>
    %98 = vector.broadcast %97 : vector<16x1xf32> to vector<16x256xf32>
    %99 = arith.addf %96, %98 : vector<16x256xf32>
    %cst_47 = arith.constant 0.000000e+00 : f32
    %100 = vector.broadcast %cst_47 : f32 to vector<16x256xf32>
    %101 = arith.maximumf %99, %100 : vector<16x256xf32>
    %c17_i32_48 = arith.constant 17 : i32
    %102 = tpu.dynamic_rotate %101 by %c17_i32_48 dim 1 : vector<16x256xf32>, i32 -> vector<16x256xf32>
    %c0_49 = arith.constant 0 : index
    %c0_50 = arith.constant 0 : index
    %103 = vector.load %arg2[%c0_49, %c0_50] : memref<8x256xf32, #tpu.memory_space<vmem>>, vector<1x256xf32>
    %104 = vector.broadcast %103 : vector<1x256xf32> to vector<16x256xf32>
    %105 = arith.mulf %102, %104 : vector<16x256xf32>
    %c16_i32_51 = arith.constant 16 : i32
    %106 = tpu.dynamic_rotate %101 by %c16_i32_51 dim 1 : vector<16x256xf32>, i32 -> vector<16x256xf32>
    %c1_52 = arith.constant 1 : index
    %c0_53 = arith.constant 0 : index
    %107 = vector.load %arg2[%c1_52, %c0_53] : memref<8x256xf32, #tpu.memory_space<vmem>>, vector<1x256xf32>
    %108 = vector.broadcast %107 : vector<1x256xf32> to vector<16x256xf32>
    %109 = arith.mulf %106, %108 : vector<16x256xf32>
    %c15_i32_54 = arith.constant 15 : i32
    %110 = tpu.dynamic_rotate %101 by %c15_i32_54 dim 1 : vector<16x256xf32>, i32 -> vector<16x256xf32>
    %c2_55 = arith.constant 2 : index
    %c0_56 = arith.constant 0 : index
    %111 = vector.load %arg2[%c2_55, %c0_56] : memref<8x256xf32, #tpu.memory_space<vmem>>, vector<1x256xf32>
    %112 = vector.broadcast %111 : vector<1x256xf32> to vector<16x256xf32>
    %113 = arith.mulf %110, %112 : vector<16x256xf32>
    %c1_i32_57 = arith.constant 1 : i32
    %114 = tpu.dynamic_rotate %101 by %c1_i32_57 dim 1 : vector<16x256xf32>, i32 -> vector<16x256xf32>
    %c3_58 = arith.constant 3 : index
    %c0_59 = arith.constant 0 : index
    %115 = vector.load %arg2[%c3_58, %c0_59] : memref<8x256xf32, #tpu.memory_space<vmem>>, vector<1x256xf32>
    %116 = vector.broadcast %115 : vector<1x256xf32> to vector<16x256xf32>
    %117 = arith.mulf %114, %116 : vector<16x256xf32>
    %c255_i32_60 = arith.constant 255 : i32
    %118 = tpu.dynamic_rotate %101 by %c255_i32_60 dim 1 : vector<16x256xf32>, i32 -> vector<16x256xf32>
    %c4_61 = arith.constant 4 : index
    %c0_62 = arith.constant 0 : index
    %119 = vector.load %arg2[%c4_61, %c0_62] : memref<8x256xf32, #tpu.memory_space<vmem>>, vector<1x256xf32>
    %120 = vector.broadcast %119 : vector<1x256xf32> to vector<16x256xf32>
    %121 = arith.mulf %118, %120 : vector<16x256xf32>
    %c241_i32_63 = arith.constant 241 : i32
    %122 = tpu.dynamic_rotate %101 by %c241_i32_63 dim 1 : vector<16x256xf32>, i32 -> vector<16x256xf32>
    %c5_64 = arith.constant 5 : index
    %c0_65 = arith.constant 0 : index
    %123 = vector.load %arg2[%c5_64, %c0_65] : memref<8x256xf32, #tpu.memory_space<vmem>>, vector<1x256xf32>
    %124 = vector.broadcast %123 : vector<1x256xf32> to vector<16x256xf32>
    %125 = arith.mulf %122, %124 : vector<16x256xf32>
    %c240_i32_66 = arith.constant 240 : i32
    %126 = tpu.dynamic_rotate %101 by %c240_i32_66 dim 1 : vector<16x256xf32>, i32 -> vector<16x256xf32>
    %c6_67 = arith.constant 6 : index
    %c0_68 = arith.constant 0 : index
    %127 = vector.load %arg2[%c6_67, %c0_68] : memref<8x256xf32, #tpu.memory_space<vmem>>, vector<1x256xf32>
    %128 = vector.broadcast %127 : vector<1x256xf32> to vector<16x256xf32>
    %129 = arith.mulf %126, %128 : vector<16x256xf32>
    %c239_i32_69 = arith.constant 239 : i32
    %130 = tpu.dynamic_rotate %101 by %c239_i32_69 dim 1 : vector<16x256xf32>, i32 -> vector<16x256xf32>
    %c7_70 = arith.constant 7 : index
    %c0_71 = arith.constant 0 : index
    %131 = vector.load %arg2[%c7_70, %c0_71] : memref<8x256xf32, #tpu.memory_space<vmem>>, vector<1x256xf32>
    %132 = vector.broadcast %131 : vector<1x256xf32> to vector<16x256xf32>
    %133 = arith.mulf %130, %132 : vector<16x256xf32>
    %c17_i32_72 = arith.constant 17 : i32
    %134 = tpu.dynamic_rotate %42 by %c17_i32_72 dim 1 : vector<8x256xf32>, i32 -> vector<8x256xf32>
    %c0_73 = arith.constant 0 : index
    %c0_74 = arith.constant 0 : index
    %135 = vector.load %arg2[%c0_73, %c0_74] : memref<8x256xf32, #tpu.memory_space<vmem>>, vector<1x256xf32>
    %136 = vector.broadcast %135 : vector<1x256xf32> to vector<8x256xf32>
    %137 = arith.mulf %134, %136 : vector<8x256xf32>
    %c16_i32_75 = arith.constant 16 : i32
    %138 = tpu.dynamic_rotate %42 by %c16_i32_75 dim 1 : vector<8x256xf32>, i32 -> vector<8x256xf32>
    %c1_76 = arith.constant 1 : index
    %c0_77 = arith.constant 0 : index
    %139 = vector.load %arg2[%c1_76, %c0_77] : memref<8x256xf32, #tpu.memory_space<vmem>>, vector<1x256xf32>
    %140 = vector.broadcast %139 : vector<1x256xf32> to vector<8x256xf32>
    %141 = arith.mulf %138, %140 : vector<8x256xf32>
    %c15_i32_78 = arith.constant 15 : i32
    %142 = tpu.dynamic_rotate %42 by %c15_i32_78 dim 1 : vector<8x256xf32>, i32 -> vector<8x256xf32>
    %c2_79 = arith.constant 2 : index
    %c0_80 = arith.constant 0 : index
    %143 = vector.load %arg2[%c2_79, %c0_80] : memref<8x256xf32, #tpu.memory_space<vmem>>, vector<1x256xf32>
    %144 = vector.broadcast %143 : vector<1x256xf32> to vector<8x256xf32>
    %145 = arith.mulf %142, %144 : vector<8x256xf32>
    %c1_i32_81 = arith.constant 1 : i32
    %146 = tpu.dynamic_rotate %42 by %c1_i32_81 dim 1 : vector<8x256xf32>, i32 -> vector<8x256xf32>
    %c3_82 = arith.constant 3 : index
    %c0_83 = arith.constant 0 : index
    %147 = vector.load %arg2[%c3_82, %c0_83] : memref<8x256xf32, #tpu.memory_space<vmem>>, vector<1x256xf32>
    %148 = vector.broadcast %147 : vector<1x256xf32> to vector<8x256xf32>
    %149 = arith.mulf %146, %148 : vector<8x256xf32>
    %c255_i32_84 = arith.constant 255 : i32
    %150 = tpu.dynamic_rotate %42 by %c255_i32_84 dim 1 : vector<8x256xf32>, i32 -> vector<8x256xf32>
    %c4_85 = arith.constant 4 : index
    %c0_86 = arith.constant 0 : index
    %151 = vector.load %arg2[%c4_85, %c0_86] : memref<8x256xf32, #tpu.memory_space<vmem>>, vector<1x256xf32>
    %152 = vector.broadcast %151 : vector<1x256xf32> to vector<8x256xf32>
    %153 = arith.mulf %150, %152 : vector<8x256xf32>
    %c241_i32_87 = arith.constant 241 : i32
    %154 = tpu.dynamic_rotate %42 by %c241_i32_87 dim 1 : vector<8x256xf32>, i32 -> vector<8x256xf32>
    %c5_88 = arith.constant 5 : index
    %c0_89 = arith.constant 0 : index
    %155 = vector.load %arg2[%c5_88, %c0_89] : memref<8x256xf32, #tpu.memory_space<vmem>>, vector<1x256xf32>
    %156 = vector.broadcast %155 : vector<1x256xf32> to vector<8x256xf32>
    %157 = arith.mulf %154, %156 : vector<8x256xf32>
    %c240_i32_90 = arith.constant 240 : i32
    %158 = tpu.dynamic_rotate %42 by %c240_i32_90 dim 1 : vector<8x256xf32>, i32 -> vector<8x256xf32>
    %c6_91 = arith.constant 6 : index
    %c0_92 = arith.constant 0 : index
    %159 = vector.load %arg2[%c6_91, %c0_92] : memref<8x256xf32, #tpu.memory_space<vmem>>, vector<1x256xf32>
    %160 = vector.broadcast %159 : vector<1x256xf32> to vector<8x256xf32>
    %161 = arith.mulf %158, %160 : vector<8x256xf32>
    %c239_i32_93 = arith.constant 239 : i32
    %162 = tpu.dynamic_rotate %42 by %c239_i32_93 dim 1 : vector<8x256xf32>, i32 -> vector<8x256xf32>
    %c7_94 = arith.constant 7 : index
    %c0_95 = arith.constant 0 : index
    %163 = vector.load %arg2[%c7_94, %c0_95] : memref<8x256xf32, #tpu.memory_space<vmem>>, vector<1x256xf32>
    %164 = vector.broadcast %163 : vector<1x256xf32> to vector<8x256xf32>
    %165 = arith.mulf %162, %164 : vector<8x256xf32>
    %166 = tpu.concatenate %105, %109, %113, %117, %101, %121, %125, %129, %133, %137, %141, %145, %149, %42, %153, %157 in 0 : vector<16x256xf32>, vector<16x256xf32>, vector<16x256xf32>, vector<16x256xf32>, vector<16x256xf32>, vector<16x256xf32>, vector<16x256xf32>, vector<16x256xf32>, vector<16x256xf32>, vector<8x256xf32>, vector<8x256xf32>, vector<8x256xf32>, vector<8x256xf32>, vector<8x256xf32>, vector<8x256xf32>, vector<8x256xf32> -> vector<200x256xf32>
    %167 = tpu.concatenate %161, %165 in 0 : vector<8x256xf32>, vector<8x256xf32> -> vector<16x256xf32>
    %168 = tpu.concatenate %166, %167 in 0 : vector<200x256xf32>, vector<16x256xf32> -> vector<216x256xf32>
    %c0_96 = arith.constant 0 : index
    %c0_97 = arith.constant 0 : index
    %169 = vector.load %arg9[%c0_96, %c0_97] : memref<8x216xbf16, #tpu.memory_space<vmem>>, vector<8x216xbf16>
    %170 = arith.truncf %168 : vector<216x256xf32> to vector<216x256xbf16>
    %cst_98 = arith.constant dense<0.000000e+00> : vector<8x256xf32>
    %171 = tpu.matmul %169, %170, %cst_98 {dimension_numbers = #tpu.dot_dimension_numbers<[1], [0], [0], [1], [0, 0, 1, 1], [], []>} : vector<8x216xbf16>, vector<216x256xbf16>, vector<8x256xf32> -> vector<8x256xf32>
    %c0_99 = arith.constant 0 : index
    %c0_100 = arith.constant 0 : index
    %172 = vector.load %arg10[%c0_99, %c0_100] : memref<8x1xf32, #tpu.memory_space<vmem>>, vector<8x1xf32>
    %173 = vector.broadcast %172 : vector<8x1xf32> to vector<8x256xf32>
    %174 = arith.addf %171, %173 : vector<8x256xf32>
    %cst_101 = arith.constant 0.000000e+00 : f32
    %175 = vector.broadcast %cst_101 : f32 to vector<8x256xf32>
    %176 = arith.maximumf %174, %175 : vector<8x256xf32>
    %c0_102 = arith.constant 0 : index
    %c0_103 = arith.constant 0 : index
    %177 = vector.load %arg11[%c0_102, %c0_103] : memref<1x72xbf16, #tpu.memory_space<vmem>>, vector<1x72xbf16>
    %c17_i32_104 = arith.constant 17 : i32
    %178 = tpu.dynamic_rotate %176 by %c17_i32_104 dim 1 : vector<8x256xf32>, i32 -> vector<8x256xf32>
    %c0_105 = arith.constant 0 : index
    %c0_106 = arith.constant 0 : index
    %179 = vector.load %arg2[%c0_105, %c0_106] : memref<8x256xf32, #tpu.memory_space<vmem>>, vector<1x256xf32>
    %180 = vector.broadcast %179 : vector<1x256xf32> to vector<8x256xf32>
    %181 = arith.mulf %178, %180 : vector<8x256xf32>
    %c16_i32_107 = arith.constant 16 : i32
    %182 = tpu.dynamic_rotate %176 by %c16_i32_107 dim 1 : vector<8x256xf32>, i32 -> vector<8x256xf32>
    %c1_108 = arith.constant 1 : index
    %c0_109 = arith.constant 0 : index
    %183 = vector.load %arg2[%c1_108, %c0_109] : memref<8x256xf32, #tpu.memory_space<vmem>>, vector<1x256xf32>
    %184 = vector.broadcast %183 : vector<1x256xf32> to vector<8x256xf32>
    %185 = arith.mulf %182, %184 : vector<8x256xf32>
    %c15_i32_110 = arith.constant 15 : i32
    %186 = tpu.dynamic_rotate %176 by %c15_i32_110 dim 1 : vector<8x256xf32>, i32 -> vector<8x256xf32>
    %c2_111 = arith.constant 2 : index
    %c0_112 = arith.constant 0 : index
    %187 = vector.load %arg2[%c2_111, %c0_112] : memref<8x256xf32, #tpu.memory_space<vmem>>, vector<1x256xf32>
    %188 = vector.broadcast %187 : vector<1x256xf32> to vector<8x256xf32>
    %189 = arith.mulf %186, %188 : vector<8x256xf32>
    %c1_i32_113 = arith.constant 1 : i32
    %190 = tpu.dynamic_rotate %176 by %c1_i32_113 dim 1 : vector<8x256xf32>, i32 -> vector<8x256xf32>
    %c3_114 = arith.constant 3 : index
    %c0_115 = arith.constant 0 : index
    %191 = vector.load %arg2[%c3_114, %c0_115] : memref<8x256xf32, #tpu.memory_space<vmem>>, vector<1x256xf32>
    %192 = vector.broadcast %191 : vector<1x256xf32> to vector<8x256xf32>
    %193 = arith.mulf %190, %192 : vector<8x256xf32>
    %c255_i32_116 = arith.constant 255 : i32
    %194 = tpu.dynamic_rotate %176 by %c255_i32_116 dim 1 : vector<8x256xf32>, i32 -> vector<8x256xf32>
    %c4_117 = arith.constant 4 : index
    %c0_118 = arith.constant 0 : index
    %195 = vector.load %arg2[%c4_117, %c0_118] : memref<8x256xf32, #tpu.memory_space<vmem>>, vector<1x256xf32>
    %196 = vector.broadcast %195 : vector<1x256xf32> to vector<8x256xf32>
    %197 = arith.mulf %194, %196 : vector<8x256xf32>
    %c241_i32_119 = arith.constant 241 : i32
    %198 = tpu.dynamic_rotate %176 by %c241_i32_119 dim 1 : vector<8x256xf32>, i32 -> vector<8x256xf32>
    %c5_120 = arith.constant 5 : index
    %c0_121 = arith.constant 0 : index
    %199 = vector.load %arg2[%c5_120, %c0_121] : memref<8x256xf32, #tpu.memory_space<vmem>>, vector<1x256xf32>
    %200 = vector.broadcast %199 : vector<1x256xf32> to vector<8x256xf32>
    %201 = arith.mulf %198, %200 : vector<8x256xf32>
    %c240_i32_122 = arith.constant 240 : i32
    %202 = tpu.dynamic_rotate %176 by %c240_i32_122 dim 1 : vector<8x256xf32>, i32 -> vector<8x256xf32>
    %c6_123 = arith.constant 6 : index
    %c0_124 = arith.constant 0 : index
    %203 = vector.load %arg2[%c6_123, %c0_124] : memref<8x256xf32, #tpu.memory_space<vmem>>, vector<1x256xf32>
    %204 = vector.broadcast %203 : vector<1x256xf32> to vector<8x256xf32>
    %205 = arith.mulf %202, %204 : vector<8x256xf32>
    %c239_i32_125 = arith.constant 239 : i32
    %206 = tpu.dynamic_rotate %176 by %c239_i32_125 dim 1 : vector<8x256xf32>, i32 -> vector<8x256xf32>
    %c7_126 = arith.constant 7 : index
    %c0_127 = arith.constant 0 : index
    %207 = vector.load %arg2[%c7_126, %c0_127] : memref<8x256xf32, #tpu.memory_space<vmem>>, vector<1x256xf32>
    %208 = vector.broadcast %207 : vector<1x256xf32> to vector<8x256xf32>
    %209 = arith.mulf %206, %208 : vector<8x256xf32>
    %210 = tpu.concatenate %181, %185, %189, %193, %176, %197, %201, %205, %209 in 0 : vector<8x256xf32>, vector<8x256xf32>, vector<8x256xf32>, vector<8x256xf32>, vector<8x256xf32>, vector<8x256xf32>, vector<8x256xf32>, vector<8x256xf32>, vector<8x256xf32> -> vector<72x256xf32>
    %211 = arith.truncf %210 : vector<72x256xf32> to vector<72x256xbf16>
    %cst_128 = arith.constant dense<0.000000e+00> : vector<1x256xf32>
    %212 = tpu.matmul %177, %211, %cst_128 {dimension_numbers = #tpu.dot_dimension_numbers<[1], [0], [0], [1], [0, 0, 1, 1], [], []>} : vector<1x72xbf16>, vector<72x256xbf16>, vector<1x256xf32> -> vector<1x256xf32>
    %c0_129 = arith.constant 0 : index
    %c0_130 = arith.constant 0 : index
    %213 = vector.load %arg12[%c0_129, %c0_130] : memref<1x1xf32, #tpu.memory_space<vmem>>, vector<1x1xf32>
    %214 = vector.broadcast %213 : vector<1x1xf32> to vector<1x256xf32>
    %215 = arith.addf %212, %214 : vector<1x256xf32>
    %cst_131 = arith.constant 0.000000e+00 : f32
    %216 = vector.broadcast %cst_131 : f32 to vector<1x256xf32>
    %217 = arith.maximumf %215, %216 : vector<1x256xf32>
    %c0_132 = arith.constant 0 : index
    %c0_133 = arith.constant 0 : index
    %c0_134 = arith.constant 0 : index
    %218 = vector.load %arg13[%c0_132, %c0_133, %c0_134] : memref<1x1x256xf32, #tpu.memory_space<vmem>>, vector<1x1x256xf32>
    %219 = vector.shape_cast %218 : vector<1x1x256xf32> to vector<1x256xf32>
    %220 = vector.shape_cast %217 : vector<1x256xf32> to vector<1x1x256xf32>
    tpu.vector_store %arg13[%c0_132, %c0_133, %c0_134], %220 {strides = array<i32>} : memref<1x1x256xf32, #tpu.memory_space<vmem>>, vector<1x1x256xf32>,
    return
  }
  func.func @transform_0(%arg0: i32) -> (i32, i32, i32) {
    %c0_i32 = arith.constant 0 : i32
    %c0_i32_0 = arith.constant 0 : i32
    %c0_i32_1 = arith.constant 0 : i32
    return %arg0, %c0_i32, %c0_i32_0 : i32, i32, i32
  }
  func.func @transform_1(%arg0: i32) -> (i32, i32) {
    %c0_i32 = arith.constant 0 : i32
    %c0_i32_0 = arith.constant 0 : i32
    %c0_i32_1 = arith.constant 0 : i32
    return %c0_i32, %c0_i32_0 : i32, i32
  }
  func.func @transform_2(%arg0: i32) -> (i32, i32) {
    %c0_i32 = arith.constant 0 : i32
    %c0_i32_0 = arith.constant 0 : i32
    %c0_i32_1 = arith.constant 0 : i32
    return %c0_i32, %c0_i32_0 : i32, i32
  }
  func.func @transform_3(%arg0: i32) -> (i32, i32) {
    %c0_i32 = arith.constant 0 : i32
    %c0_i32_0 = arith.constant 0 : i32
    %c0_i32_1 = arith.constant 0 : i32
    return %c0_i32, %c0_i32_0 : i32, i32
  }
  func.func @transform_4(%arg0: i32) -> (i32, i32) {
    %c0_i32 = arith.constant 0 : i32
    %c0_i32_0 = arith.constant 0 : i32
    %c0_i32_1 = arith.constant 0 : i32
    return %c0_i32, %c0_i32_0 : i32, i32
  }
  func.func @transform_5(%arg0: i32) -> (i32, i32) {
    %c0_i32 = arith.constant 0 : i32
    %c0_i32_0 = arith.constant 0 : i32
    %c0_i32_1 = arith.constant 0 : i32
    return %c0_i32, %c0_i32_0 : i32, i32
  }
  func.func @transform_6(%arg0: i32) -> (i32, i32) {
    %c0_i32 = arith.constant 0 : i32
    %c0_i32_0 = arith.constant 0 : i32
    %c0_i32_1 = arith.constant 0 : i32
    return %c0_i32, %c0_i32_0 : i32, i32
  }
  func.func @transform_7(%arg0: i32) -> (i32, i32) {
    %c0_i32 = arith.constant 0 : i32
    %c0_i32_0 = arith.constant 0 : i32
    %c0_i32_1 = arith.constant 0 : i32
    return %c0_i32, %c0_i32_0 : i32, i32
  }
  func.func @transform_8(%arg0: i32) -> (i32, i32) {
    %c0_i32 = arith.constant 0 : i32
    %c0_i32_0 = arith.constant 0 : i32
    %c0_i32_1 = arith.constant 0 : i32
    return %c0_i32, %c0_i32_0 : i32, i32
  }
  func.func @transform_9(%arg0: i32) -> (i32, i32) {
    %c0_i32 = arith.constant 0 : i32
    %c0_i32_0 = arith.constant 0 : i32
    %c0_i32_1 = arith.constant 0 : i32
    return %c0_i32, %c0_i32_0 : i32, i32
  }
  func.func @transform_10(%arg0: i32) -> (i32, i32) {
    %c0_i32 = arith.constant 0 : i32
    %c0_i32_0 = arith.constant 0 : i32
    %c0_i32_1 = arith.constant 0 : i32
    return %c0_i32, %c0_i32_0 : i32, i32
  }
  func.func @transform_11(%arg0: i32) -> (i32, i32) {
    %c0_i32 = arith.constant 0 : i32
    %c0_i32_0 = arith.constant 0 : i32
    %c0_i32_1 = arith.constant 0 : i32
    return %c0_i32, %c0_i32_0 : i32, i32
  }
  func.func @transform_12(%arg0: i32) -> (i32, i32, i32) {
    %c0_i32 = arith.constant 0 : i32
    %c0_i32_0 = arith.constant 0 : i32
    %c0_i32_1 = arith.constant 0 : i32
    return %arg0, %c0_i32, %c0_i32_0 : i32, i32, i32
  }
}

</mosaic_0001>

<llo_original>
// kernel: ness_detector_forward.1
$region0: #{ness_detector_forward.1}
  #allocation0 [shape = 'u32[]', space=smem, size = 0x4, offset = 0x4, fixed_abs, tag = 'smem constant byte address 0x4 - core index']
  #allocation1 [shape = 'u32[144,128]{1,0:T(1,128)}', space=vmem, size = 0x12000, scoped, tag = 'internal scratch']
  #allocation2 [shape = 'f32[1,1]{1,0:T(1,128)S(1)}', space=vmem, size = 0x200, scoped, tag = 'scoped memory for ness_detector_forward.1']
  %s0 = inlined_call_operand.vmem [shape: f32[2,8,256], index: 0, kind: input, shape index: {}]
  %s1 = inlined_call_operand.vmem [shape: f32[8,256], index: 1, kind: input, shape index: {}]
  %s2 = inlined_call_operand.vmem [shape: f32[8,256], index: 2, kind: input, shape index: {}]
  %s3 = inlined_call_operand.vmem [shape: f32[2,256], index: 3, kind: input, shape index: {}]
  %s4 = inlined_call_operand.vmem [shape: bf16[8,72], index: 4, kind: input, shape index: {}]
  %s5 = inlined_call_operand.vmem [shape: f32[8,1], index: 5, kind: input, shape index: {}]
  %s6 = inlined_call_operand.vmem [shape: bf16[16,72], index: 6, kind: input, shape index: {}]
  %s7 = inlined_call_operand.vmem [shape: f32[16,1], index: 7, kind: input, shape index: {}]
  %s8 = inlined_call_operand.vmem [shape: bf16[8,216], index: 8, kind: input, shape index: {}]
  %s9 = inlined_call_operand.vmem [shape: f32[8,1], index: 9, kind: input, shape index: {}]
  %s10 = inlined_call_operand.vmem [shape: bf16[1,72], index: 10, kind: input, shape index: {}]
  %s11 = inlined_call_operand.<no memory space> [shape: f32[1,1], index: 11, kind: input, shape index: {}]
  %s12 = inlined_call_operand.vmem [shape: f32[2,1,256], index: 12, kind: output, shape index: {}]
  %s13 = sld [smem:[#allocation0]]
  $region81: #{ness_detector_forward.1} parent=0
    _
  %s15 = ssub.s32 1, %s13
  %s16 = scalar_select 0, %s15, %s13
  %v17 = vstv %s11
  %18 = vst [vmem:[#allocation2] sm:$0x1] %v17
  loop: start=0, step=1, limit=4
  $region2: #{ness_detector_forward.1} parent=0 // loop_pre_header
    _
  $region3: #{ness_detector_forward.1} parent=0 // loop_header
    %s20 = sphi 0, %s24
    %p21 = scmp.ge.s32.totalorder %s20, 4
    %s30 = sphi 0, %s32
    %s33 = sphi 0, %s30
    %s34 = sphi 0, %s33
    %s50 = sphi 0, %s34
    %s54 = sphi 0, %s54
    %s56 = sphi 0, %s54
    %s57 = sphi 0, %s56
    %s71 = sphi 0, %s57
    %s75 = sphi 0, %s75
    %s77 = sphi 0, %s75
    %s78 = sphi 0, %s77
    %s92 = sphi 0, %s78
    %s96 = sphi 0, %s96
    %s98 = sphi 0, %s96
    %s99 = sphi 0, %s98
    %s113 = sphi 0, %s99
    %s117 = sphi 0, %s117
    %s119 = sphi 0, %s117
    %s120 = sphi 0, %s119
    %s134 = sphi 0, %s120
    %s138 = sphi 0, %s138
    %s140 = sphi 0, %s138
    %s141 = sphi 0, %s140
    %s155 = sphi 0, %s141
    %s159 = sphi 0, %s159
    %s161 = sphi 0, %s159
    %s162 = sphi 0, %s161
    %s176 = sphi 0, %s162
    %s180 = sphi 0, %s180
    %s182 = sphi 0, %s180
    %s183 = sphi 0, %s182
    %s197 = sphi 0, %s183
    %s201 = sphi 0, %s201
    %s203 = sphi 0, %s201
    %s204 = sphi 0, %s203
    %s218 = sphi 0, %s204
    %s222 = sphi 0, %s222
    %s224 = sphi 0, %s222
    %s225 = sphi 0, %s224
    %s239 = sphi 0, %s225
    %s243 = sphi 0, %s243
    %s245 = sphi 0, %s243
    %s246 = sphi 0, %s245
    %s260 = sphi 0, %s246
    %s264 = sphi 0, %s264
    %s266 = sphi 0, %s264
    %s267 = sphi 0, %s266
    %s281 = sphi 0, %s267
    %s287 = sphi 0, %s289
    %s290 = sphi 0, %s287
    %s291 = sphi 0, %s290
    %s307 = sphi 0, %s291
  $region4: #{ness_detector_forward.1} parent=0 // loop_header_branch
    %23 = sbr.rel (%p21) target = $region8
  $region5: #{ness_detector_forward.1} parent=0 // loop_body
    %s25 = ssub.s32 %s20, 1
    %s26 = ssub.s32 %s20, 2
    %s27 = sadd.s32 %s20, 1
    %s28 = ssub.s32 %s20, %s27
    %p29 = scmp.eq.s32.totalorder %s28, 0
    %s31 = sadd.s32 %s30, 1
    %s32 = scalar_select %p29, %s30, %s31
    %p35 = pneg %p29
    %p36 = scmp.eq.s32.totalorder %s20, 1
    %p37 = por %p35, %p36
    %p38 = scmp.ne.s32.totalorder %s30, %s33
    %p39 = scmp.eq.s32.totalorder %s20, 0
    %p40 = por %p38, %p39
    %p41 = scmp.ne.s32.totalorder %s30, %s33
    %p42 = scmp.eq.s32.totalorder %s25, 1
    %p43 = por %p41, %p42
    %p44 = scmp.ne.s32.totalorder %s33, %s34
    %p45 = scmp.eq.s32.totalorder %s25, 0
    %p46 = por %p44, %p45
    %p47 = scmp.ne.s32.totalorder %s33, %s34
    %p48 = scmp.eq.s32.totalorder %s26, 1
    %p49 = por %p47, %p48
    %p51 = scmp.ne.s32.totalorder %s34, %s50
    %p52 = scmp.eq.s32.totalorder %s26, 0
    %p53 = por %p51, %p52
    %s55 = sadd.s32 %s54, 1
    %p58 = scmp.eq.s32.totalorder %s20, 1
    %p59 = scmp.ne.s32.totalorder %s54, %s56
    %p60 = scmp.eq.s32.totalorder %s20, 0
    %p61 = por %p59, %p60
    %p62 = scmp.ne.s32.totalorder %s54, %s56
    %p63 = scmp.eq.s32.totalorder %s25, 1
    %p64 = por %p62, %p63
    %p65 = scmp.ne.s32.totalorder %s56, %s57
    %p66 = scmp.eq.s32.totalorder %s25, 0
    %p67 = por %p65, %p66
    %p68 = scmp.ne.s32.totalorder %s56, %s57
    %p69 = scmp.eq.s32.totalorder %s26, 1
    %p70 = por %p68, %p69
    %p72 = scmp.ne.s32.totalorder %s57, %s71
    %p73 = scmp.eq.s32.totalorder %s26, 0
    %p74 = por %p72, %p73
    %s76 = sadd.s32 %s75, 1
    %p79 = scmp.eq.s32.totalorder %s20, 1
    %p80 = scmp.ne.s32.totalorder %s75, %s77
    %p81 = scmp.eq.s32.totalorder %s20, 0
    %p82 = por %p80, %p81
    %p83 = scmp.ne.s32.totalorder %s75, %s77
    %p84 = scmp.eq.s32.totalorder %s25, 1
    %p85 = por %p83, %p84
    %p86 = scmp.ne.s32.totalorder %s77, %s78
    %p87 = scmp.eq.s32.totalorder %s25, 0
    %p88 = por %p86, %p87
    %p89 = scmp.ne.s32.totalorder %s77, %s78
    %p90 = scmp.eq.s32.totalorder %s26, 1
    %p91 = por %p89, %p90
    %p93 = scmp.ne.s32.totalorder %s78, %s92
    %p94 = scmp.eq.s32.totalorder %s26, 0
    %p95 = por %p93, %p94
    %s97 = sadd.s32 %s96, 1
    %p100 = scmp.eq.s32.totalorder %s20, 1
    %p101 = scmp.ne.s32.totalorder %s96, %s98
    %p102 = scmp.eq.s32.totalorder %s20, 0
    %p103 = por %p101, %p102
    %p104 = scmp.ne.s32.totalorder %s96, %s98
    %p105 = scmp.eq.s32.totalorder %s25, 1
    %p106 = por %p104, %p105
    %p107 = scmp.ne.s32.totalorder %s98, %s99
    %p108 = scmp.eq.s32.totalorder %s25, 0
    %p109 = por %p107, %p108
    %p110 = scmp.ne.s32.totalorder %s98, %s99
    %p111 = scmp.eq.s32.totalorder %s26, 1
    %p112 = por %p110, %p111
    %p114 = scmp.ne.s32.totalorder %s99, %s113
    %p115 = scmp.eq.s32.totalorder %s26, 0
    %p116 = por %p114, %p115
    %s118 = sadd.s32 %s117, 1
    %p121 = scmp.eq.s32.totalorder %s20, 1
    %p122 = scmp.ne.s32.totalorder %s117, %s119
    %p123 = scmp.eq.s32.totalorder %s20, 0
    %p124 = por %p122, %p123
    %p125 = scmp.ne.s32.totalorder %s117, %s119
    %p126 = scmp.eq.s32.totalorder %s25, 1
    %p127 = por %p125, %p126
    %p128 = scmp.ne.s32.totalorder %s119, %s120
    %p129 = scmp.eq.s32.totalorder %s25, 0
    %p130 = por %p128, %p129
    %p131 = scmp.ne.s32.totalorder %s119, %s120
    %p132 = scmp.eq.s32.totalorder %s26, 1
    %p133 = por %p131, %p132
    %p135 = scmp.ne.s32.totalorder %s120, %s134
    %p136 = scmp.eq.s32.totalorder %s26, 0
    %p137 = por %p135, %p136
    %s139 = sadd.s32 %s138, 1
    %p142 = scmp.eq.s32.totalorder %s20, 1
    %p143 = scmp.ne.s32.totalorder %s138, %s140
    %p144 = scmp.eq.s32.totalorder %s20, 0
    %p145 = por %p143, %p144
    %p146 = scmp.ne.s32.totalorder %s138, %s140
    %p147 = scmp.eq.s32.totalorder %s25, 1
    %p148 = por %p146, %p147
    %p149 = scmp.ne.s32.totalorder %s140, %s141
    %p150 = scmp.eq.s32.totalorder %s25, 0
    %p151 = por %p149, %p150
    %p152 = scmp.ne.s32.totalorder %s140, %s141
    %p153 = scmp.eq.s32.totalorder %s26, 1
    %p154 = por %p152, %p153
    %p156 = scmp.ne.s32.totalorder %s141, %s155
    %p157 = scmp.eq.s32.totalorder %s26, 0
    %p158 = por %p156, %p157
    %s160 = sadd.s32 %s159, 1
    %p163 = scmp.eq.s32.totalorder %s20, 1
    %p164 = scmp.ne.s32.totalorder %s159, %s161
    %p165 = scmp.eq.s32.totalorder %s20, 0
    %p166 = por %p164, %p165
    %p167 = scmp.ne.s32.totalorder %s159, %s161
    %p168 = scmp.eq.s32.totalorder %s25, 1
    %p169 = por %p167, %p168
    %p170 = scmp.ne.s32.totalorder %s161, %s162
    %p171 = scmp.eq.s32.totalorder %s25, 0
    %p172 = por %p170, %p171
    %p173 = scmp.ne.s32.totalorder %s161, %s162
    %p174 = scmp.eq.s32.totalorder %s26, 1
    %p175 = por %p173, %p174
    %p177 = scmp.ne.s32.totalorder %s162, %s176
    %p178 = scmp.eq.s32.totalorder %s26, 0
    %p179 = por %p177, %p178
    %s181 = sadd.s32 %s180, 1
    %p184 = scmp.eq.s32.totalorder %s20, 1
    %p185 = scmp.ne.s32.totalorder %s180, %s182
    %p186 = scmp.eq.s32.totalorder %s20, 0
    %p187 = por %p185, %p186
    %p188 = scmp.ne.s32.totalorder %s180, %s182
    %p189 = scmp.eq.s32.totalorder %s25, 1
    %p190 = por %p188, %p189
    %p191 = scmp.ne.s32.totalorder %s182, %s183
    %p192 = scmp.eq.s32.totalorder %s25, 0
    %p193 = por %p191, %p192
    %p194 = scmp.ne.s32.totalorder %s182, %s183
    %p195 = scmp.eq.s32.totalorder %s26, 1
    %p196 = por %p194, %p195
    %p198 = scmp.ne.s32.totalorder %s183, %s197
    %p199 = scmp.eq.s32.totalorder %s26, 0
    %p200 = por %p198, %p199
    %s202 = sadd.s32 %s201, 1
    %p205 = scmp.eq.s32.totalorder %s20, 1
    %p206 = scmp.ne.s32.totalorder %s201, %s203
    %p207 = scmp.eq.s32.totalorder %s20, 0
    %p208 = por %p206, %p207
    %p209 = scmp.ne.s32.totalorder %s201, %s203
    %p210 = scmp.eq.s32.totalorder %s25, 1
    %p211 = por %p209, %p210
    %p212 = scmp.ne.s32.totalorder %s203, %s204
    %p213 = scmp.eq.s32.totalorder %s25, 0
    %p214 = por %p212, %p213
    %p215 = scmp.ne.s32.totalorder %s203, %s204
    %p216 = scmp.eq.s32.totalorder %s26, 1
    %p217 = por %p215, %p216
    %p219 = scmp.ne.s32.totalorder %s204, %s218
    %p220 = scmp.eq.s32.totalorder %s26, 0
    %p221 = por %p219, %p220
    %s223 = sadd.s32 %s222, 1
    %p226 = scmp.eq.s32.totalorder %s20, 1
    %p227 = scmp.ne.s32.totalorder %s222, %s224
    %p228 = scmp.eq.s32.totalorder %s20, 0
    %p229 = por %p227, %p228
    %p230 = scmp.ne.s32.totalorder %s222, %s224
    %p231 = scmp.eq.s32.totalorder %s25, 1
    %p232 = por %p230, %p231
    %p233 = scmp.ne.s32.totalorder %s224, %s225
    %p234 = scmp.eq.s32.totalorder %s25, 0
    %p235 = por %p233, %p234
    %p236 = scmp.ne.s32.totalorder %s224, %s225
    %p237 = scmp.eq.s32.totalorder %s26, 1
    %p238 = por %p236, %p237
    %p240 = scmp.ne.s32.totalorder %s225, %s239
    %p241 = scmp.eq.s32.totalorder %s26, 0
    %p242 = por %p240, %p241
    %s244 = sadd.s32 %s243, 1
    %p247 = scmp.eq.s32.totalorder %s20, 1
    %p248 = scmp.ne.s32.totalorder %s243, %s245
    %p249 = scmp.eq.s32.totalorder %s20, 0
    %p250 = por %p248, %p249
    %p251 = scmp.ne.s32.totalorder %s243, %s245
    %p252 = scmp.eq.s32.totalorder %s25, 1
    %p253 = por %p251, %p252
    %p254 = scmp.ne.s32.totalorder %s245, %s246
    %p255 = scmp.eq.s32.totalorder %s25, 0
    %p256 = por %p254, %p255
    %p257 = scmp.ne.s32.totalorder %s245, %s246
    %p258 = scmp.eq.s32.totalorder %s26, 1
    %p259 = por %p257, %p258
    %p261 = scmp.ne.s32.totalorder %s246, %s260
    %p262 = scmp.eq.s32.totalorder %s26, 0
    %p263 = por %p261, %p262
    %s265 = sadd.s32 %s264, 1
    %p268 = scmp.eq.s32.totalorder %s20, 1
    %p269 = scmp.ne.s32.totalorder %s264, %s266
    %p270 = scmp.eq.s32.totalorder %s20, 0
    %p271 = por %p269, %p270
    %p272 = scmp.ne.s32.totalorder %s264, %s266
    %p273 = scmp.eq.s32.totalorder %s25, 1
    %p274 = por %p272, %p273
    %p275 = scmp.ne.s32.totalorder %s266, %s267
    %p276 = scmp.eq.s32.totalorder %s25, 0
    %p277 = por %p275, %p276
    %p278 = scmp.ne.s32.totalorder %s266, %s267
    %p279 = scmp.eq.s32.totalorder %s26, 1
    %p280 = por %p278, %p279
    %p282 = scmp.ne.s32.totalorder %s267, %s281
    %p283 = scmp.eq.s32.totalorder %s26, 0
    %p284 = por %p282, %p283
    %s285 = ssub.s32 %s20, %s27
    %p286 = scmp.eq.s32.totalorder %s285, 0
    %s288 = sadd.s32 %s287, 1
    %s289 = scalar_select %p286, %s287, %s288
    %p292 = pneg %p286
    %p293 = scmp.eq.s32.totalorder %s20, 1
    %p294 = por %p292, %p293
    %p295 = scmp.ne.s32.totalorder %s287, %s290
    %p296 = scmp.eq.s32.totalorder %s20, 0
    %p297 = por %p295, %p296
    %p298 = scmp.ne.s32.totalorder %s287, %s290
    %p299 = scmp.eq.s32.totalorder %s25, 1
    %p300 = por %p298, %p299
    %p301 = scmp.ne.s32.totalorder %s290, %s291
    %p302 = scmp.eq.s32.totalorder %s25, 0
    %p303 = por %p301, %p302
    %p304 = scmp.ne.s32.totalorder %s290, %s291
    %p305 = scmp.eq.s32.totalorder %s26, 1
    %p306 = por %p304, %p305
    %p308 = scmp.ne.s32.totalorder %s291, %s307
    %p309 = scmp.eq.s32.totalorder %s26, 0
    %p310 = por %p308, %p309
    %p311 = scmp.le.s32.totalorder 1, %s20
    %p312 = scmp.lt.s32.totalorder %s20, 3
    %p313 = pnand %p311, %p312
    %p314 = pneg %p313
    // Predicated region
    $region9: #{ness_detector_forward.1} parent=5 // pred_check
      _
    $region10: #{ness_detector_forward.1} parent=5 // pred_check_branch
      %316 = sbr.rel (%p313) target = $region12
    $region11: #{ness_detector_forward.1} parent=5 // pred_region
      %s317 = ssub.s32 %s20, 1
      // Predicated region
      $region13: #{ness_detector_forward.1} parent=11 // pred_check
        %p318 = pneg %p67
      $region14: #{ness_detector_forward.1} parent=11 // pred_check_branch
        %320 = sbr.rel (%p318) target = $region16
      $region15: #{ness_detector_forward.1} parent=11 // pred_region
        _
      $region16: #{ness_detector_forward.1} parent=11 // pred_fallthru
        _
      // Predicated region
      $region17: #{ness_detector_forward.1} parent=11 // pred_check
        %p321 = pneg %p88
      $region18: #{ness_detector_forward.1} parent=11 // pred_check_branch
        %323 = sbr.rel (%p321) target = $region20
      $region19: #{ness_detector_forward.1} parent=11 // pred_region
        _
      $region20: #{ness_detector_forward.1} parent=11 // pred_fallthru
        _
      // Predicated region
      $region21: #{ness_detector_forward.1} parent=11 // pred_check
        %p324 = pneg %p109
      $region22: #{ness_detector_forward.1} parent=11 // pred_check_branch
        %326 = sbr.rel (%p324) target = $region24
      $region23: #{ness_detector_forward.1} parent=11 // pred_region
        _
      $region24: #{ness_detector_forward.1} parent=11 // pred_fallthru
        _
      // Predicated region
      $region25: #{ness_detector_forward.1} parent=11 // pred_check
        %p327 = pneg %p130
      $region26: #{ness_detector_forward.1} parent=11 // pred_check_branch
        %329 = sbr.rel (%p327) target = $region28
      $region27: #{ness_detector_forward.1} parent=11 // pred_region
        _
      $region28: #{ness_detector_forward.1} parent=11 // pred_fallthru
        _
      // Predicated region
      $region29: #{ness_detector_forward.1} parent=11 // pred_check
        %p330 = pneg %p151
      $region30: #{ness_detector_forward.1} parent=11 // pred_check_branch
        %332 = sbr.rel (%p330) target = $region32
      $region31: #{ness_detector_forward.1} parent=11 // pred_region
        _
      $region32: #{ness_detector_forward.1} parent=11 // pred_fallthru
        _
      // Predicated region
      $region33: #{ness_detector_forward.1} parent=11 // pred_check
        %p333 = pneg %p172
      $region34: #{ness_detector_forward.1} parent=11 // pred_check_branch
        %335 = sbr.rel (%p333) target = $region36
      $region35: #{ness_detector_forward.1} parent=11 // pred_region
        _
      $region36: #{ness_detector_forward.1} parent=11 // pred_fallthru
        _
      // Predicated region
      $region37: #{ness_detector_forward.1} parent=11 // pred_check
        %p336 = pneg %p193
      $region38: #{ness_detector_forward.1} parent=11 // pred_check_branch
        %338 = sbr.rel (%p336) target = $region40
      $region39: #{ness_detector_forward.1} parent=11 // pred_region
        _
      $region40: #{ness_detector_forward.1} parent=11 // pred_fallthru
        _
      // Predicated region
      $region41: #{ness_detector_forward.1} parent=11 // pred_check
        %p339 = pneg %p214
      $region42: #{ness_detector_forward.1} parent=11 // pred_check_branch
        %341 = sbr.rel (%p339) target = $region44
      $region43: #{ness_detector_forward.1} parent=11 // pred_region
        _
      $region44: #{ness_detector_forward.1} parent=11 // pred_fallthru
        _
      // Predicated region
      $region45: #{ness_detector_forward.1} parent=11 // pred_check
        %p342 = pneg %p235
      $region46: #{ness_detector_forward.1} parent=11 // pred_check_branch
        %344 = sbr.rel (%p342) target = $region48
      $region47: #{ness_detector_forward.1} parent=11 // pred_region
        _
      $region48: #{ness_detector_forward.1} parent=11 // pred_fallthru
        _
      // Predicated region
      $region49: #{ness_detector_forward.1} parent=11 // pred_check
        %p345 = pneg %p256
      $region50: #{ness_detector_forward.1} parent=11 // pred_check_branch
        %347 = sbr.rel (%p345) target = $region52
      $region51: #{ness_detector_forward.1} parent=11 // pred_region
        _
      $region52: #{ness_detector_forward.1} parent=11 // pred_fallthru
        _
      // Predicated region
      $region53: #{ness_detector_forward.1} parent=11 // pred_check
        %p348 = pneg %p277
      $region54: #{ness_detector_forward.1} parent=11 // pred_check_branch
        %350 = sbr.rel (%p348) target = $region56
      $region55: #{ness_detector_forward.1} parent=11 // pred_region
        _
      $region56: #{ness_detector_forward.1} parent=11 // pred_fallthru
        _
    $region12: #{ness_detector_forward.1} parent=5 // pred_fallthru
      _
    %p351 = scmp.lt.s32.totalorder %s20, 2
    // Predicated region
    $region57: #{ness_detector_forward.1} parent=5 // pred_check
      %p352 = pneg %p351
    $region58: #{ness_detector_forward.1} parent=5 // pred_check_branch
      %354 = sbr.rel (%p352) target = $region60
    $region59: #{ness_detector_forward.1} parent=5 // pred_region
      // Predicated region
      $region61: #{ness_detector_forward.1} parent=59 // pred_check
        %p355 = pneg %p40
      $region62: #{ness_detector_forward.1} parent=59 // pred_check_branch
        %357 = sbr.rel (%p355) target = $region64
      $region63: #{ness_detector_forward.1} parent=59 // pred_region
        %p358 = scmp.lt.s32.totalorder %s20, 1
        %s359 = scalar_select %p358, %s20, 1
        %s360 = smul.addr %s359, 2
        %s361 = smul.addr %s360, 8
        %s362 = scalar_lea.vmem %s0, %s361
      $region64: #{ness_detector_forward.1} parent=59 // pred_fallthru
        _
    $region60: #{ness_detector_forward.1} parent=5 // pred_fallthru
      _
    %p363 = scmp.le.s32.totalorder 1, %s20
    %p364 = scmp.lt.s32.totalorder %s20, 3
    %p365 = pnand %p363, %p364
    %p366 = pneg %p365
    // Predicated region
    $region65: #{ness_detector_forward.1} parent=5 // pred_check
      _
    $region66: #{ness_detector_forward.1} parent=5 // pred_check_branch
      %368 = sbr.rel (%p365) target = $region68
    $region67: #{ness_detector_forward.1} parent=5 // pred_region
      %s369 = ssub.s32 %s20, 1
      %p370 = scmp.lt.s32.totalorder %s25, 1
      %s371 = scalar_select %p370, %s25, 1
      %s372 = smul.addr %s371, 2
      %s373 = smul.addr %s372, 8
      %s374 = scalar_lea.vmem %s0, %s373
      %p375 = pneg %p46
      %p376 = pneg %p43
      %p377 = pneg %p67
      %p378 = pneg %p64
      %p379 = pneg %p88
      %p380 = pneg %p85
      %p381 = pneg %p109
      %p382 = pneg %p106
      %p383 = pneg %p130
      %p384 = pneg %p127
      %p385 = pneg %p151
      %p386 = pneg %p148
      %p387 = pneg %p172
      %p388 = pneg %p169
      %p389 = pneg %p193
      %p390 = pneg %p190
      %p391 = pneg %p214
      %p392 = pneg %p211
      %p393 = pneg %p235
      %p394 = pneg %p232
      %p395 = pneg %p256
      %p396 = pneg %p253
      %p397 = pneg %p277
      %p398 = pneg %p274
      %p399 = pneg %p303
      %p400 = pneg %p300
      %p401 = scmp.lt.s32.totalorder %s25, 1
      %s402 = scalar_select %p401, %s25, 1
      %s403 = smul.addr %s402, 2
      %s404 = scalar_lea.vmem %s12, %s403
      %p405 = scmp.lt.s32.totalorder %s25, 1
      %s406 = scalar_select %p405, %s25, 1
      %s407 = smul.addr %s406, 2
      %s408 = smul.addr %s407, 8
      %s409 = scalar_lea.vmem %s0, %s408
      %p410 = scmp.lt.s32.totalorder %s25, 1
      %s411 = scalar_select %p410, %s25, 1
      %s412 = smul.addr %s411, 2
      %s413 = scalar_lea.vmem %s12, %s412
      %v415 = vld [vmem:[%s409] sm:$0xff]
      %v416 = vld [vmem:[%s409 + $0x8] sm:$0xff]
      %v417 = vld [vmem:[%s4] sm:$0xf]
      %418 = vrot.lane.b32.xlu0 %v415, 17
      %v419 = vpop.permute.xlu0 %418
      %420 = vrot.lane.b32.xlu0 %v416, 17
      %v421 = vpop.permute.xlu0 %420
      %v422 = vlaneseq
      %v423 = vand.u32 %v422, 127
      %vm424 = vcmp.lt.s32.totalorder %v423, 17
      %v425 = vsel %vm424, %v419, %v421
      %v426 = vsel %vm424, %v421, %v419
      %v427 = vld [vmem:[%s1] ss:$8 sm:$0x3]
      %v429 = vlaneseq
      %v430 = vshrl.u32 %v429, 7
      %v431 = vsub.s32 0, %v430
      %v432 = vrot.slane %v427, %v431
      %v433 = vlaneseq
      %v434 = vshrl.u32 %v433, 7
      %v435 = vsub.s32 1, %v434
      %v436 = vrot.slane %v427, %v435
      %v439 = vmul.f32 %v426, %v432
      %v440 = vmul.f32 %v425, %v436
      %441 = vrot.lane.b32.xlu0 %v415, 16
      %v442 = vpop.permute.xlu0 %441
      %443 = vrot.lane.b32.xlu0 %v416, 16
      %v444 = vpop.permute.xlu0 %443
      %vm445 = vcmp.lt.s32.totalorder %v423, 16
      %v446 = vsel %vm445, %v442, %v444
      %v447 = vsel %vm445, %v444, %v442
      %s448 = scalar_lea.vmem %s1, 1
      %v449 = vld [vmem:[%s448] ss:$8 sm:$0x3]
      %v451 = vlaneseq
      %v452 = vshrl.u32 %v451, 7
      %v453 = vsub.s32 0, %v452
      %v454 = vrot.slane %v449, %v453
      %v455 = vlaneseq
      %v456 = vshrl.u32 %v455, 7
      %v457 = vsub.s32 1, %v456
      %v458 = vrot.slane %v449, %v457
      %v461 = vmul.f32 %v447, %v454
      %v462 = vmul.f32 %v446, %v458
      %463 = vrot.lane.b32.xlu0 %v415, 15
      %v464 = vpop.permute.xlu0 %463
      %465 = vrot.lane.b32.xlu0 %v416, 15
      %v466 = vpop.permute.xlu0 %465
      %vm467 = vcmp.lt.s32.totalorder %v423, 15
      %v468 = vsel %vm467, %v464, %v466
      %v469 = vsel %vm467, %v466, %v464
      %s470 = scalar_lea.vmem %s1, 2
      %v471 = vld [vmem:[%s470] ss:$8 sm:$0x3]
      %v473 = vlaneseq
      %v474 = vshrl.u32 %v473, 7
      %v475 = vsub.s32 0, %v474
      %v476 = vrot.slane %v471, %v475
      %v477 = vlaneseq
      %v478 = vshrl.u32 %v477, 7
      %v479 = vsub.s32 1, %v478
      %v480 = vrot.slane %v471, %v479
      %v483 = vmul.f32 %v469, %v476
      %v484 = vmul.f32 %v468, %v480
      %485 = vrot.lane.b32.xlu0 %v415, 1
      %v486 = vpop.permute.xlu0 %485
      %487 = vrot.lane.b32.xlu0 %v416, 1
      %v488 = vpop.permute.xlu0 %487
      %vm489 = vcmp.lt.s32.totalorder %v423, 1
      %v490 = vsel %vm489, %v486, %v488
      %v491 = vsel %vm489, %v488, %v486
      %s492 = scalar_lea.vmem %s1, 3
      %v493 = vld [vmem:[%s492] ss:$8 sm:$0x3]
      %v495 = vlaneseq
      %v496 = vshrl.u32 %v495, 7
      %v497 = vsub.s32 0, %v496
      %v498 = vrot.slane %v493, %v497
      %v499 = vlaneseq
      %v500 = vshrl.u32 %v499, 7
      %v501 = vsub.s32 1, %v500
      %v502 = vrot.slane %v493, %v501
      %v505 = vmul.f32 %v491, %v498
      %v506 = vmul.f32 %v490, %v502
      %507 = vrot.lane.b32.xlu0 %v415, 127
      %v508 = vpop.permute.xlu0 %507
      %509 = vrot.lane.b32.xlu0 %v416, 127
      %v510 = vpop.permute.xlu0 %509
      %vm511 = vcmp.lt.s32.totalorder %v423, 127
      %v512 = vsel %vm511, %v508, %v510
      %v513 = vsel %vm511, %v510, %v508
      %s514 = scalar_lea.vmem %s1, 4
      %v515 = vld [vmem:[%s514] ss:$8 sm:$0x3]
      %v517 = vlaneseq
      %v518 = vshrl.u32 %v517, 7
      %v519 = vsub.s32 0, %v518
      %v520 = vrot.slane %v515, %v519
      %v521 = vlaneseq
      %v522 = vshrl.u32 %v521, 7
      %v523 = vsub.s32 1, %v522
      %v524 = vrot.slane %v515, %v523
      %v527 = vmul.f32 %v512, %v520
      %v528 = vmul.f32 %v513, %v524
      %529 = vrot.lane.b32.xlu0 %v415, 113
      %v530 = vpop.permute.xlu0 %529
      %531 = vrot.lane.b32.xlu0 %v416, 113
      %v532 = vpop.permute.xlu0 %531
      %vm533 = vcmp.lt.s32.totalorder %v423, 113
      %v534 = vsel %vm533, %v530, %v532
      %v535 = vsel %vm533, %v532, %v530
      %s536 = scalar_lea.vmem %s1, 5
      %v537 = vld [vmem:[%s536] ss:$8 sm:$0x3]
      %v539 = vlaneseq
      %v540 = vshrl.u32 %v539, 7
      %v541 = vsub.s32 0, %v540
      %v542 = vrot.slane %v537, %v541
      %v543 = vlaneseq
      %v544 = vshrl.u32 %v543, 7
      %v545 = vsub.s32 1, %v544
      %v546 = vrot.slane %v537, %v545
      %v549 = vmul.f32 %v534, %v542
      %v550 = vmul.f32 %v535, %v546
      %551 = vrot.lane.b32.xlu0 %v415, 112
      %v552 = vpop.permute.xlu0 %551
      %553 = vrot.lane.b32.xlu0 %v416, 112
      %v554 = vpop.permute.xlu0 %553
      %vm555 = vcmp.lt.s32.totalorder %v423, 112
      %v556 = vsel %vm555, %v552, %v554
      %v557 = vsel %vm555, %v554, %v552
      %s558 = scalar_lea.vmem %s1, 6
      %v559 = vld [vmem:[%s558] ss:$8 sm:$0x3]
      %v561 = vlaneseq
      %v562 = vshrl.u32 %v561, 7
      %v563 = vsub.s32 0, %v562
      %v564 = vrot.slane %v559, %v563
      %v565 = vlaneseq
      %v566 = vshrl.u32 %v565, 7
      %v567 = vsub.s32 1, %v566
      %v568 = vrot.slane %v559, %v567
      %v571 = vmul.f32 %v556, %v564
      %v572 = vmul.f32 %v557, %v568
      %573 = vrot.lane.b32.xlu0 %v415, 111
      %v574 = vpop.permute.xlu0 %573
      %575 = vrot.lane.b32.xlu0 %v416, 111
      %v576 = vpop.permute.xlu0 %575
      %vm577 = vcmp.lt.s32.totalorder %v423, 111
      %v578 = vsel %vm577, %v574, %v576
      %v579 = vsel %vm577, %v576, %v574
      %s580 = scalar_lea.vmem %s1, 7
      %v581 = vld [vmem:[%s580] ss:$8 sm:$0x3]
      %v583 = vlaneseq
      %v584 = vshrl.u32 %v583, 7
      %v585 = vsub.s32 0, %v584
      %v586 = vrot.slane %v581, %v585
      %v587 = vlaneseq
      %v588 = vshrl.u32 %v587, 7
      %v589 = vsub.s32 1, %v588
      %v590 = vrot.slane %v581, %v589
      %v593 = vmul.f32 %v578, %v586
      %v594 = vmul.f32 %v579, %v590
      %v595 = vpack.c.bf16 %v461, %v439
      %v596 = vpack.c.bf16 %v462, %v440
      %v597 = vpack.c.bf16 %v505, %v483
      %v598 = vpack.c.bf16 %v506, %v484
      %v599 = vpack.c.bf16 %v527, %v415
      %v600 = vpack.c.bf16 %v528, %v416
      %v601 = vpack.c.bf16 %v571, %v549
      %v602 = vpack.c.bf16 %v572, %v550
      %v603 = vpack.c.bf16 %v593, %v593
      %v604 = vpack.c.bf16 %v594, %v594
      %v605 = vld [vmem:[%s5] sm:$0xff]
      %607 = vset.pattern.permute.xlu0 0
      %608 = vperm.xlu0 %607, %v605
      %v609 = vpop.permute.xlu0 %608
      %vm611 = vcmask 588800
      %v613 = vsel %vm611, %v417, 0
      %vm615 = vcmask 1043456
      %v617 = vsel %vm615, %v603, 0
      %v620 = vsel %vm615, %v604, 0
      %622 = vmatprep.subr.bf16.mxu0 %v596
      %623 = vmatpush1.bf16.msra.mxu0 %v595
      %624 = vmatprep.subr.bf16.mxu0 %v598
      %625 = vmatpush1.bf16.msra.mxu0 %v597
      %626 = vmatprep.subr.bf16.mxu0 %v600
      %627 = vmatpush1.bf16.msra.mxu0 %v599
      %628 = vmatprep.subr.bf16.mxu0 %v602
      %629 = vmatpush1.bf16.msra.mxu0 %v601
      %630 = vmatprep.subr.bf16.mxu0 %v620
      %631 = vmatpush1.bf16.msra.mxu0 %v617
      %632 = vmatprep.subr.bf16.mxu0 0
      %633 = vmatpush1.bf16.msra.mxu0 0
      %634 = vmatprep.subr.bf16.mxu0 0
      %635 = vmatpush1.bf16.msra.mxu0 0
      %636 = vmatprep.subr.bf16.mxu0 0
      %637 = vmatpush1.bf16.msra.mxu0 0
      %638 = vmatprep.subr.bf16.mxu0 0
      %639 = vmatpush1.bf16.msra.mxu0 0
      %640 = vmatprep.subr.bf16.mxu0 0
      %641 = vmatpush1.bf16.msra.mxu0 0
      %642 = vmatprep.subr.bf16.mxu0 0
      %643 = vmatpush1.bf16.msra.mxu0 0
      %644 = vmatprep.subr.bf16.mxu0 0
      %645 = vmatpush1.bf16.msra.mxu0 0
      %646 = vmatprep.subr.bf16.mxu0 0
      %647 = vmatpush1.bf16.msra.mxu0 0
      %648 = vmatprep.subr.bf16.mxu0 0
      %649 = vmatpush1.bf16.msra.mxu0 0
      %650 = vmatprep.subr.bf16.mxu0 0
      %651 = vmatpush1.bf16.msra.mxu0 0
      %652 = vmatprep.subr.bf16.mxu0 0
      %653 = vmatpush1.bf16.msra.mxu0 0
      %654 = vmatprep.mubr.bf16.mxu0 0
      %655 = vmatmul.mubr.bf16.gmra.mrb[0].mxu0 %v613
      %v656 = vpop.f32.mrb[0].mxu0
      %v657 = vadd.f32 %v609, %v656
      %v658 = vpop.f32.mrb[0].mxu0
      %v659 = vadd.f32 %v609, %v658
      %v660 = vpop.f32.mrb[0].mxu0
      %v661 = vpop.f32.mrb[0].mxu0
      %662 = vdwg.mxu0
      %v663 = vmax.f32 %v657, 0.0
      %v664 = vmax.f32 %v659, 0.0
      %v665 = vld [vmem:[%s3] ss:$2 sm:$0x3]
      %vm666 = vcmp.gt.f32.partialorder %v665, 0.5
      %s667 = scalar_lea.vmem %s3, 1
      %v668 = vld [vmem:[%s667] ss:$2 sm:$0x3]
      %vm669 = vcmp.gt.f32.partialorder %v668, 0.5
      %670 = vrot.lane.b32.xlu0 %v663, 127
      %v671 = vpop.permute.xlu0 %670
      %672 = vrot.lane.b32.xlu0 %v664, 127
      %v673 = vpop.permute.xlu0 %672
      %v674 = vsel %vm511, %v671, %v673
      %v675 = vsel %vm511, %v673, %v671
      %676 = vrot.lane.b32.xlu0 %v663, 1
      %v677 = vpop.permute.xlu0 %676
      %678 = vrot.lane.b32.xlu0 %v664, 1
      %v679 = vpop.permute.xlu0 %678
      %v680 = vsel %vm489, %v677, %v679
      %v681 = vsel %vm489, %v679, %v677
      %v682 = vsel %vm666, 1, 0
      %v683 = vlaneseq
      %v684 = vshrl.u32 %v683, 7
      %v685 = vsub.s32 0, %v684
      %v686 = vrot.slane %v682, %v685
      %v687 = vlaneseq
      %v688 = vshrl.u32 %v687, 7
      %v689 = vsub.s32 1, %v688
      %v690 = vrot.slane %v682, %v689
      %vm691 = vcmp.eq.s32.totalorder %v686, 1
      %vm692 = vcmp.eq.s32.totalorder %v690, 1
      %v693 = vsel %vm691, %v674, %v681
      %v694 = vsel %vm692, %v675, %v680
      %v695 = vmax.f32 %v663, %v693
      %v696 = vmax.f32 %v664, %v694
      %697 = vrot.lane.b32.xlu0 %v695, 112
      %v698 = vpop.permute.xlu0 %697
      %699 = vrot.lane.b32.xlu0 %v696, 112
      %v700 = vpop.permute.xlu0 %699
      %v701 = vsel %vm555, %v698, %v700
      %v702 = vsel %vm555, %v700, %v698
      %703 = vrot.lane.b32.xlu0 %v695, 16
      %v704 = vpop.permute.xlu0 %703
      %705 = vrot.lane.b32.xlu0 %v696, 16
      %v706 = vpop.permute.xlu0 %705
      %v707 = vsel %vm445, %v704, %v706
      %v708 = vsel %vm445, %v706, %v704
      %v709 = vsel %vm669, 1, 0
      %v710 = vlaneseq
      %v711 = vshrl.u32 %v710, 7
      %v712 = vsub.s32 0, %v711
      %v713 = vrot.slane %v709, %v712
      %v714 = vlaneseq
      %v715 = vshrl.u32 %v714, 7
      %v716 = vsub.s32 1, %v715
      %v717 = vrot.slane %v709, %v716
      %vm718 = vcmp.eq.s32.totalorder %v713, 1
      %vm719 = vcmp.eq.s32.totalorder %v717, 1
      %v720 = vsel %vm718, %v701, %v708
      %v721 = vsel %vm719, %v702, %v707
      %v722 = vmax.f32 %v695, %v720
      %v723 = vmax.f32 %v696, %v721
      %v724 = vld [vmem:[%s6] sm:$0xf]
      %v725 = vld [vmem:[%s6 + $0x4] sm:$0xf]
      %726 = vrot.lane.b32.xlu0 %v722, 34
      %v727 = vpop.permute.xlu0 %726
      %728 = vrot.lane.b32.xlu0 %v723, 34
      %v729 = vpop.permute.xlu0 %728
      %vm730 = vcmp.lt.s32.totalorder %v423, 34
      %v731 = vsel %vm730, %v727, %v729
      %v732 = vsel %vm730, %v729, %v727
      %v733 = vld [vmem:[%s2] ss:$8 sm:$0x3]
      %v735 = vlaneseq
      %v736 = vshrl.u32 %v735, 7
      %v737 = vsub.s32 0, %v736
      %v738 = vrot.slane %v733, %v737
      %v739 = vlaneseq
      %v740 = vshrl.u32 %v739, 7
      %v741 = vsub.s32 1, %v740
      %v742 = vrot.slane %v733, %v741
      %v745 = vmul.f32 %v732, %v738
      %v746 = vmul.f32 %v731, %v742
      %747 = vrot.lane.b32.xlu0 %v722, 32
      %v748 = vpop.permute.xlu0 %747
      %749 = vrot.lane.b32.xlu0 %v723, 32
      %v750 = vpop.permute.xlu0 %749
      %vm751 = vcmp.lt.s32.totalorder %v423, 32
      %v752 = vsel %vm751, %v748, %v750
      %v753 = vsel %vm751, %v750, %v748
      %s754 = scalar_lea.vmem %s2, 1
      %v755 = vld [vmem:[%s754] ss:$8 sm:$0x3]
      %v757 = vlaneseq
      %v758 = vshrl.u32 %v757, 7
      %v759 = vsub.s32 0, %v758
      %v760 = vrot.slane %v755, %v759
      %v761 = vlaneseq
      %v762 = vshrl.u32 %v761, 7
      %v763 = vsub.s32 1, %v762
      %v764 = vrot.slane %v755, %v763
      %v767 = vmul.f32 %v753, %v760
      %v768 = vmul.f32 %v752, %v764
      %769 = vrot.lane.b32.xlu0 %v722, 30
      %v770 = vpop.permute.xlu0 %769
      %771 = vrot.lane.b32.xlu0 %v723, 30
      %v772 = vpop.permute.xlu0 %771
      %vm773 = vcmp.lt.s32.totalorder %v423, 30
      %v774 = vsel %vm773, %v770, %v772
      %v775 = vsel %vm773, %v772, %v770
      %s776 = scalar_lea.vmem %s2, 2
      %v777 = vld [vmem:[%s776] ss:$8 sm:$0x3]
      %v779 = vlaneseq
      %v780 = vshrl.u32 %v779, 7
      %v781 = vsub.s32 0, %v780
      %v782 = vrot.slane %v777, %v781
      %v783 = vlaneseq
      %v784 = vshrl.u32 %v783, 7
      %v785 = vsub.s32 1, %v784
      %v786 = vrot.slane %v777, %v785
      %v789 = vmul.f32 %v775, %v782
      %v790 = vmul.f32 %v774, %v786
      %791 = vrot.lane.b32.xlu0 %v722, 2
      %v792 = vpop.permute.xlu0 %791
      %793 = vrot.lane.b32.xlu0 %v723, 2
      %v794 = vpop.permute.xlu0 %793
      %vm795 = vcmp.lt.s32.totalorder %v423, 2
      %v796 = vsel %vm795, %v792, %v794
      %v797 = vsel %vm795, %v794, %v792
      %s798 = scalar_lea.vmem %s2, 3
      %v799 = vld [vmem:[%s798] ss:$8 sm:$0x3]
      %v801 = vlaneseq
      %v802 = vshrl.u32 %v801, 7
      %v803 = vsub.s32 0, %v802
      %v804 = vrot.slane %v799, %v803
      %v805 = vlaneseq
      %v806 = vshrl.u32 %v805, 7
      %v807 = vsub.s32 1, %v806
      %v808 = vrot.slane %v799, %v807
      %v811 = vmul.f32 %v797, %v804
      %v812 = vmul.f32 %v796, %v808
      %813 = vrot.lane.b32.xlu0 %v722, 126
      %v814 = vpop.permute.xlu0 %813
      %815 = vrot.lane.b32.xlu0 %v723, 126
      %v816 = vpop.permute.xlu0 %815
      %vm817 = vcmp.lt.s32.totalorder %v423, 126
      %v818 = vsel %vm817, %v814, %v816
      %v819 = vsel %vm817, %v816, %v814
      %s820 = scalar_lea.vmem %s2, 4
      %v821 = vld [vmem:[%s820] ss:$8 sm:$0x3]
      %v823 = vlaneseq
      %v824 = vshrl.u32 %v823, 7
      %v825 = vsub.s32 0, %v824
      %v826 = vrot.slane %v821, %v825
      %v827 = vlaneseq
      %v828 = vshrl.u32 %v827, 7
      %v829 = vsub.s32 1, %v828
      %v830 = vrot.slane %v821, %v829
      %v833 = vmul.f32 %v818, %v826
      %v834 = vmul.f32 %v819, %v830
      %835 = vrot.lane.b32.xlu0 %v722, 98
      %v836 = vpop.permute.xlu0 %835
      %837 = vrot.lane.b32.xlu0 %v723, 98
      %v838 = vpop.permute.xlu0 %837
      %vm839 = vcmp.lt.s32.totalorder %v423, 98
      %v840 = vsel %vm839, %v836, %v838
      %v841 = vsel %vm839, %v838, %v836
      %s842 = scalar_lea.vmem %s2, 5
      %v843 = vld [vmem:[%s842] ss:$8 sm:$0x3]
      %v845 = vlaneseq
      %v846 = vshrl.u32 %v845, 7
      %v847 = vsub.s32 0, %v846
      %v848 = vrot.slane %v843, %v847
      %v849 = vlaneseq
      %v850 = vshrl.u32 %v849, 7
      %v851 = vsub.s32 1, %v850
      %v852 = vrot.slane %v843, %v851
      %v855 = vmul.f32 %v840, %v848
      %v856 = vmul.f32 %v841, %v852
      %857 = vrot.lane.b32.xlu0 %v722, 96
      %v858 = vpop.permute.xlu0 %857
      %859 = vrot.lane.b32.xlu0 %v723, 96
      %v860 = vpop.permute.xlu0 %859
      %vm861 = vcmp.lt.s32.totalorder %v423, 96
      %v862 = vsel %vm861, %v858, %v860
      %v863 = vsel %vm861, %v860, %v858
      %s864 = scalar_lea.vmem %s2, 6
      %v865 = vld [vmem:[%s864] ss:$8 sm:$0x3]
      %v867 = vlaneseq
      %v868 = vshrl.u32 %v867, 7
      %v869 = vsub.s32 0, %v868
      %v870 = vrot.slane %v865, %v869
      %v871 = vlaneseq
      %v872 = vshrl.u32 %v871, 7
      %v873 = vsub.s32 1, %v872
      %v874 = vrot.slane %v865, %v873
      %v877 = vmul.f32 %v862, %v870
      %v878 = vmul.f32 %v863, %v874
      %879 = vrot.lane.b32.xlu0 %v722, 94
      %v880 = vpop.permute.xlu0 %879
      %881 = vrot.lane.b32.xlu0 %v723, 94
      %v882 = vpop.permute.xlu0 %881
      %vm883 = vcmp.lt.s32.totalorder %v423, 94
      %v884 = vsel %vm883, %v880, %v882
      %v885 = vsel %vm883, %v882, %v880
      %s886 = scalar_lea.vmem %s2, 7
      %v887 = vld [vmem:[%s886] ss:$8 sm:$0x3]
      %v889 = vlaneseq
      %v890 = vshrl.u32 %v889, 7
      %v891 = vsub.s32 0, %v890
      %v892 = vrot.slane %v887, %v891
      %v893 = vlaneseq
      %v894 = vshrl.u32 %v893, 7
      %v895 = vsub.s32 1, %v894
      %v896 = vrot.slane %v887, %v895
      %v899 = vmul.f32 %v884, %v892
      %v900 = vmul.f32 %v885, %v896
      %v901 = vpack.c.bf16 %v767, %v745
      %v902 = vpack.c.bf16 %v768, %v746
      %v903 = vpack.c.bf16 %v811, %v789
      %v904 = vpack.c.bf16 %v812, %v790
      %v905 = vpack.c.bf16 %v833, %v722
      %v906 = vpack.c.bf16 %v834, %v723
      %v907 = vpack.c.bf16 %v877, %v855
      %v908 = vpack.c.bf16 %v878, %v856
      %v909 = vpack.c.bf16 %v899, %v899
      %v910 = vpack.c.bf16 %v900, %v900
      %v911 = vld [vmem:[%s7] sm:$0xff]
      %v912 = vld [vmem:[%s7 + $0x8] sm:$0xff]
      %914 = vset.pattern.permute.xlu0 0
      %915 = vperm.xlu0 %914, %v911
      %v916 = vpop.permute.xlu0 %915
      %919 = vset.pattern.permute.xlu0 0
      %920 = vperm.xlu0 %919, %v912
      %v921 = vpop.permute.xlu0 %920
      %v925 = vunpack.c.l.b16 %v724
      %v926 = vunpack.c.l.b16 %v725
      %v927 = vpack.c.b16 %v926, %v925
      %v929 = vsel %vm611, %v927, 0
      %v932 = vsel %vm615, %v909, 0
      %v935 = vsel %vm615, %v910, 0
      %937 = vmatprep.subr.bf16.mxu0 %v902
      %938 = vmatpush1.bf16.msra.mxu0 %v901
      %939 = vmatprep.subr.bf16.mxu0 %v904
      %940 = vmatpush1.bf16.msra.mxu0 %v903
      %941 = vmatprep.subr.bf16.mxu0 %v906
      %942 = vmatpush1.bf16.msra.mxu0 %v905
      %943 = vmatprep.subr.bf16.mxu0 %v908
      %944 = vmatpush1.bf16.msra.mxu0 %v907
      %945 = vmatprep.subr.bf16.mxu0 %v935
      %946 = vmatpush1.bf16.msra.mxu0 %v932
      %947 = vmatprep.subr.bf16.mxu0 0
      %948 = vmatpush1.bf16.msra.mxu0 0
      %949 = vmatprep.subr.bf16.mxu0 0
      %950 = vmatpush1.bf16.msra.mxu0 0
      %951 = vmatprep.subr.bf16.mxu0 0
      %952 = vmatpush1.bf16.msra.mxu0 0
      %953 = vmatprep.subr.bf16.mxu0 0
      %954 = vmatpush1.bf16.msra.mxu0 0
      %955 = vmatprep.subr.bf16.mxu0 0
      %956 = vmatpush1.bf16.msra.mxu0 0
      %957 = vmatprep.subr.bf16.mxu0 0
      %958 = vmatpush1.bf16.msra.mxu0 0
      %959 = vmatprep.subr.bf16.mxu0 0
      %960 = vmatpush1.bf16.msra.mxu0 0
      %961 = vmatprep.subr.bf16.mxu0 0
      %962 = vmatpush1.bf16.msra.mxu0 0
      %963 = vmatprep.subr.bf16.mxu0 0
      %964 = vmatpush1.bf16.msra.mxu0 0
      %965 = vmatprep.subr.bf16.mxu0 0
      %966 = vmatpush1.bf16.msra.mxu0 0
      %967 = vmatprep.subr.bf16.mxu0 0
      %968 = vmatpush1.bf16.msra.mxu0 0
      %969 = vmatprep.mubr.bf16.mxu0 0
      %970 = vmatmul.mubr.bf16.gmra.mrb[0].mxu0 %v929
      %v971 = vpop.f32.mrb[0].mxu0
      %v972 = vadd.f32 %v916, %v971
      %v973 = vpop.f32.mrb[0].mxu0
      %v974 = vadd.f32 %v916, %v973
      %v975 = vpop.f32.mrb[0].mxu0
      %v976 = vadd.f32 %v921, %v975
      %v977 = vpop.f32.mrb[0].mxu0
      %v978 = vadd.f32 %v921, %v977
      %979 = vdwg.mxu0
      %v980 = vmax.f32 %v972, 0.0
      %v981 = vmax.f32 %v974, 0.0
      %v982 = vmax.f32 %v976, 0.0
      %v983 = vmax.f32 %v978, 0.0
      %984 = vrot.lane.b32.xlu0 %v980, 17
      %v985 = vpop.permute.xlu0 %984
      %986 = vrot.lane.b32.xlu0 %v982, 17
      %v987 = vpop.permute.xlu0 %986
      %988 = vrot.lane.b32.xlu0 %v981, 17
      %v989 = vpop.permute.xlu0 %988
      %990 = vrot.lane.b32.xlu0 %v983, 17
      %v991 = vpop.permute.xlu0 %990
      %v992 = vsel %vm424, %v985, %v989
      %v993 = vsel %vm424, %v987, %v991
      %v994 = vsel %vm424, %v989, %v985
      %v995 = vsel %vm424, %v991, %v987
      %v996 = vmul.f32 %v994, %v432
      %v997 = vmul.f32 %v992, %v436
      %v998 = vmul.f32 %v995, %v432
      %v999 = vmul.f32 %v993, %v436
      %1000 = vrot.lane.b32.xlu0 %v980, 16
      %v1001 = vpop.permute.xlu0 %1000
      %1002 = vrot.lane.b32.xlu0 %v982, 16
      %v1003 = vpop.permute.xlu0 %1002
      %1004 = vrot.lane.b32.xlu0 %v981, 16
      %v1005 = vpop.permute.xlu0 %1004
      %1006 = vrot.lane.b32.xlu0 %v983, 16
      %v1007 = vpop.permute.xlu0 %1006
      %v1008 = vsel %vm445, %v1001, %v1005
      %v1009 = vsel %vm445, %v1003, %v1007
      %v1010 = vsel %vm445, %v1005, %v1001
      %v1011 = vsel %vm445, %v1007, %v1003
      %v1012 = vmul.f32 %v1010, %v454
      %v1013 = vmul.f32 %v1008, %v458
      %v1014 = vmul.f32 %v1011, %v454
      %v1015 = vmul.f32 %v1009, %v458
      %1016 = vrot.lane.b32.xlu0 %v980, 15
      %v1017 = vpop.permute.xlu0 %1016
      %1018 = vrot.lane.b32.xlu0 %v982, 15
      %v1019 = vpop.permute.xlu0 %1018
      %1020 = vrot.lane.b32.xlu0 %v981, 15
      %v1021 = vpop.permute.xlu0 %1020
      %1022 = vrot.lane.b32.xlu0 %v983, 15
      %v1023 = vpop.permute.xlu0 %1022
      %v1024 = vsel %vm467, %v1017, %v1021
      %v1025 = vsel %vm467, %v1019, %v1023
      %v1026 = vsel %vm467, %v1021, %v1017
      %v1027 = vsel %vm467, %v1023, %v1019
      %v1028 = vmul.f32 %v1026, %v476
      %v1029 = vmul.f32 %v1024, %v480
      %v1030 = vmul.f32 %v1027, %v476
      %v1031 = vmul.f32 %v1025, %v480
      %1032 = vrot.lane.b32.xlu0 %v980, 1
      %v1033 = vpop.permute.xlu0 %1032
      %1034 = vrot.lane.b32.xlu0 %v982, 1
      %v1035 = vpop.permute.xlu0 %1034
      %1036 = vrot.lane.b32.xlu0 %v981, 1
      %v1037 = vpop.permute.xlu0 %1036
      %1038 = vrot.lane.b32.xlu0 %v983, 1
      %v1039 = vpop.permute.xlu0 %1038
      %v1040 = vsel %vm489, %v1033, %v1037
      %v1041 = vsel %vm489, %v1035, %v1039
      %v1042 = vsel %vm489, %v1037, %v1033
      %v1043 = vsel %vm489, %v1039, %v1035
      %v1044 = vmul.f32 %v1042, %v498
      %v1045 = vmul.f32 %v1040, %v502
      %v1046 = vmul.f32 %v1043, %v498
      %v1047 = vmul.f32 %v1041, %v502
      %1048 = vrot.lane.b32.xlu0 %v980, 127
      %v1049 = vpop.permute.xlu0 %1048
      %1050 = vrot.lane.b32.xlu0 %v982, 127
      %v1051 = vpop.permute.xlu0 %1050
      %1052 = vrot.lane.b32.xlu0 %v981, 127
      %v1053 = vpop.permute.xlu0 %1052
      %1054 = vrot.lane.b32.xlu0 %v983, 127
      %v1055 = vpop.permute.xlu0 %1054
      %v1056 = vsel %vm511, %v1049, %v1053
      %v1057 = vsel %vm511, %v1051, %v1055
      %v1058 = vsel %vm511, %v1053, %v1049
      %v1059 = vsel %vm511, %v1055, %v1051
      %v1060 = vmul.f32 %v1056, %v520
      %v1061 = vmul.f32 %v1058, %v524
      %v1062 = vmul.f32 %v1057, %v520
      %v1063 = vmul.f32 %v1059, %v524
      %1064 = vrot.lane.b32.xlu0 %v980, 113
      %v1065 = vpop.permute.xlu0 %1064
      %1066 = vrot.lane.b32.xlu0 %v982, 113
      %v1067 = vpop.permute.xlu0 %1066
      %1068 = vrot.lane.b32.xlu0 %v981, 113
      %v1069 = vpop.permute.xlu0 %1068
      %1070 = vrot.lane.b32.xlu0 %v983, 113
      %v1071 = vpop.permute.xlu0 %1070
      %v1072 = vsel %vm533, %v1065, %v1069
      %v1073 = vsel %vm533, %v1067, %v1071
      %v1074 = vsel %vm533, %v1069, %v1065
      %v1075 = vsel %vm533, %v1071, %v1067
      %v1076 = vmul.f32 %v1072, %v542
      %v1077 = vmul.f32 %v1074, %v546
      %v1078 = vmul.f32 %v1073, %v542
      %v1079 = vmul.f32 %v1075, %v546
      %1080 = vrot.lane.b32.xlu0 %v980, 112
      %v1081 = vpop.permute.xlu0 %1080
      %1082 = vrot.lane.b32.xlu0 %v982, 112
      %v1083 = vpop.permute.xlu0 %1082
      %1084 = vrot.lane.b32.xlu0 %v981, 112
      %v1085 = vpop.permute.xlu0 %1084
      %1086 = vrot.lane.b32.xlu0 %v983, 112
      %v1087 = vpop.permute.xlu0 %1086
      %v1088 = vsel %vm555, %v1081, %v1085
      %v1089 = vsel %vm555, %v1083, %v1087
      %v1090 = vsel %vm555, %v1085, %v1081
      %v1091 = vsel %vm555, %v1087, %v1083
      %v1092 = vmul.f32 %v1088, %v564
      %v1093 = vmul.f32 %v1090, %v568
      %v1094 = vmul.f32 %v1089, %v564
      %v1095 = vmul.f32 %v1091, %v568
      %1096 = vrot.lane.b32.xlu0 %v980, 111
      %v1097 = vpop.permute.xlu0 %1096
      %1098 = vrot.lane.b32.xlu0 %v982, 111
      %v1099 = vpop.permute.xlu0 %1098
      %1100 = vrot.lane.b32.xlu0 %v981, 111
      %v1101 = vpop.permute.xlu0 %1100
      %1102 = vrot.lane.b32.xlu0 %v983, 111
      %v1103 = vpop.permute.xlu0 %1102
      %v1104 = vsel %vm577, %v1097, %v1101
      %v1105 = vsel %vm577, %v1099, %v1103
      %v1106 = vsel %vm577, %v1101, %v1097
      %v1107 = vsel %vm577, %v1103, %v1099
      %v1108 = vmul.f32 %v1104, %v586
      %v1109 = vmul.f32 %v1106, %v590
      %v1110 = vmul.f32 %v1105, %v586
      %v1111 = vmul.f32 %v1107, %v590
      %1112 = vrot.lane.b32.xlu0 %v663, 17
      %v1113 = vpop.permute.xlu0 %1112
      %1114 = vrot.lane.b32.xlu0 %v664, 17
      %v1115 = vpop.permute.xlu0 %1114
      %v1116 = vsel %vm424, %v1113, %v1115
      %v1117 = vsel %vm424, %v1115, %v1113
      %v1118 = vmul.f32 %v1117, %v432
      %v1119 = vmul.f32 %v1116, %v436
      %1120 = vrot.lane.b32.xlu0 %v663, 16
      %v1121 = vpop.permute.xlu0 %1120
      %1122 = vrot.lane.b32.xlu0 %v664, 16
      %v1123 = vpop.permute.xlu0 %1122
      %v1124 = vsel %vm445, %v1121, %v1123
      %v1125 = vsel %vm445, %v1123, %v1121
      %v1126 = vmul.f32 %v1125, %v454
      %v1127 = vmul.f32 %v1124, %v458
      %1128 = vrot.lane.b32.xlu0 %v663, 15
      %v1129 = vpop.permute.xlu0 %1128
      %1130 = vrot.lane.b32.xlu0 %v664, 15
      %v1131 = vpop.permute.xlu0 %1130
      %v1132 = vsel %vm467, %v1129, %v1131
      %v1133 = vsel %vm467, %v1131, %v1129
      %v1134 = vmul.f32 %v1133, %v476
      %v1135 = vmul.f32 %v1132, %v480
      %v1136 = vmul.f32 %v681, %v498
      %v1137 = vmul.f32 %v680, %v502
      %v1138 = vmul.f32 %v674, %v520
      %v1139 = vmul.f32 %v675, %v524
      %1140 = vrot.lane.b32.xlu0 %v663, 113
      %v1141 = vpop.permute.xlu0 %1140
      %1142 = vrot.lane.b32.xlu0 %v664, 113
      %v1143 = vpop.permute.xlu0 %1142
      %v1144 = vsel %vm533, %v1141, %v1143
      %v1145 = vsel %vm533, %v1143, %v1141
      %v1146 = vmul.f32 %v1144, %v542
      %v1147 = vmul.f32 %v1145, %v546
      %1148 = vrot.lane.b32.xlu0 %v663, 112
      %v1149 = vpop.permute.xlu0 %1148
      %1150 = vrot.lane.b32.xlu0 %v664, 112
      %v1151 = vpop.permute.xlu0 %1150
      %v1152 = vsel %vm555, %v1149, %v1151
      %v1153 = vsel %vm555, %v1151, %v1149
      %v1154 = vmul.f32 %v1152, %v564
      %v1155 = vmul.f32 %v1153, %v568
      %1156 = vrot.lane.b32.xlu0 %v663, 111
      %v1157 = vpop.permute.xlu0 %1156
      %1158 = vrot.lane.b32.xlu0 %v664, 111
      %v1159 = vpop.permute.xlu0 %1158
      %v1160 = vsel %vm577, %v1157, %v1159
      %v1161 = vsel %vm577, %v1159, %v1157
      %v1162 = vmul.f32 %v1160, %v586
      %v1163 = vmul.f32 %v1161, %v590
      %v1164 = vld [vmem:[%s8] sm:$0xff]
      %v1165 = vpack.c.bf16 %v998, %v996
      %v1166 = vpack.c.bf16 %v999, %v997
      %v1167 = vpack.c.bf16 %v1014, %v1012
      %v1168 = vpack.c.bf16 %v1015, %v1013
      %v1169 = vpack.c.bf16 %v1030, %v1028
      %v1170 = vpack.c.bf16 %v1031, %v1029
      %v1171 = vpack.c.bf16 %v1046, %v1044
      %v1172 = vpack.c.bf16 %v1047, %v1045
      %v1173 = vpack.c.bf16 %v982, %v980
      %v1174 = vpack.c.bf16 %v983, %v981
      %v1175 = vpack.c.bf16 %v1062, %v1060
      %v1176 = vpack.c.bf16 %v1063, %v1061
      %v1177 = vpack.c.bf16 %v1078, %v1076
      %v1178 = vpack.c.bf16 %v1079, %v1077
      %v1179 = vpack.c.bf16 %v1094, %v1092
      %v1180 = vpack.c.bf16 %v1095, %v1093
      %v1181 = vpack.c.bf16 %v1110, %v1108
      %v1182 = vpack.c.bf16 %v1111, %v1109
      %v1183 = vpack.c.bf16 %v1126, %v1118
      %v1184 = vpack.c.bf16 %v1127, %v1119
      %v1185 = vpack.c.bf16 %v1136, %v1134
      %v1186 = vpack.c.bf16 %v1137, %v1135
      %v1187 = vpack.c.bf16 %v1138, %v663
      %v1188 = vpack.c.bf16 %v1139, %v664
      %v1189 = vpack.c.bf16 %v1154, %v1146
      %v1190 = vpack.c.bf16 %v1155, %v1147
      %v1191 = vpack.c.bf16 %v1162, %v1162
      %v1192 = vpack.c.bf16 %v1163, %v1163
      %v1193 = vld [vmem:[%s9] sm:$0xff]
      %1195 = vset.pattern.permute.xlu0 0
      %1196 = vperm.xlu0 %1195, %v1193
      %v1197 = vpop.permute.xlu0 %1196
      %v1200 = vunpack.c.l.b16 %v1164
      %v1201 = vunpack.c.h.b16 %v1164
      %v1202 = vpack.c.b16 %v1200, %v1200
      %v1203 = vpack.c.b16 %v1201, %v1201
      %vm1205 = vcmask 719872
      %v1207 = vsel %vm1205, %v1203, 0
      %v1210 = vsel %vm615, %v1191, 0
      %v1213 = vsel %vm615, %v1192, 0
      %1215 = vmatprep.subr.bf16.mxu0 %v1166
      %1216 = vmatpush1.bf16.msra.mxu0 %v1165
      %1217 = vmatprep.subr.bf16.mxu0 %v1168
      %1218 = vmatpush1.bf16.msra.mxu0 %v1167
      %1219 = vmatprep.subr.bf16.mxu0 %v1170
      %1220 = vmatpush1.bf16.msra.mxu0 %v1169
      %1221 = vmatprep.subr.bf16.mxu0 %v1172
      %1222 = vmatpush1.bf16.msra.mxu0 %v1171
      %1223 = vmatprep.subr.bf16.mxu0 %v1174
      %1224 = vmatpush1.bf16.msra.mxu0 %v1173
      %1225 = vmatprep.subr.bf16.mxu0 %v1176
      %1226 = vmatpush1.bf16.msra.mxu0 %v1175
      %1227 = vmatprep.subr.bf16.mxu0 %v1178
      %1228 = vmatpush1.bf16.msra.mxu0 %v1177
      %1229 = vmatprep.subr.bf16.mxu0 %v1180
      %1230 = vmatpush1.bf16.msra.mxu0 %v1179
      %1231 = vmatprep.subr.bf16.mxu0 %v1182
      %1232 = vmatpush1.bf16.msra.mxu0 %v1181
      %1233 = vmatprep.subr.bf16.mxu0 %v1184
      %1234 = vmatpush1.bf16.msra.mxu0 %v1183
      %1235 = vmatprep.subr.bf16.mxu0 %v1186
      %1236 = vmatpush1.bf16.msra.mxu0 %v1185
      %1237 = vmatprep.subr.bf16.mxu0 %v1188
      %1238 = vmatpush1.bf16.msra.mxu0 %v1187
      %1239 = vmatprep.subr.bf16.mxu0 %v1190
      %1240 = vmatpush1.bf16.msra.mxu0 %v1189
      %1241 = vmatprep.subr.bf16.mxu0 %v1213
      %1242 = vmatpush1.bf16.msra.mxu0 %v1210
      %1243 = vmatprep.subr.bf16.mxu0 0
      %1244 = vmatpush1.bf16.msra.mxu0 0
      %1245 = vmatprep.subr.bf16.mxu0 0
      %1246 = vmatpush1.bf16.msra.mxu0 0
      %1247 = vmatprep.mubr.bf16.mxu0 %v1207
      %1248 = vmatmul.mubr.bf16.gmra.mrb[0].mxu0 %v1202
      %v1249 = vpop.f32.mrb[0].mxu0
      %v1250 = vadd.f32 %v1197, %v1249
      %v1251 = vpop.f32.mrb[0].mxu0
      %v1252 = vadd.f32 %v1197, %v1251
      %v1253 = vpop.f32.mrb[0].mxu0
      %v1254 = vpop.f32.mrb[0].mxu0
      %1255 = vdwg.mxu0
      %v1256 = vmax.f32 %v1250, 0.0
      %v1257 = vmax.f32 %v1252, 0.0
      %v1258 = vld [vmem:[%s10] sm:$0x1]
      %1259 = vrot.lane.b32.xlu0 %v1256, 17
      %v1260 = vpop.permute.xlu0 %1259
      %1261 = vrot.lane.b32.xlu0 %v1257, 17
      %v1262 = vpop.permute.xlu0 %1261
      %v1263 = vsel %vm424, %v1260, %v1262
      %v1264 = vsel %vm424, %v1262, %v1260
      %v1265 = vmul.f32 %v1264, %v432
      %v1266 = vmul.f32 %v1263, %v436
      %1267 = vrot.lane.b32.xlu0 %v1256, 16
      %v1268 = vpop.permute.xlu0 %1267
      %1269 = vrot.lane.b32.xlu0 %v1257, 16
      %v1270 = vpop.permute.xlu0 %1269
      %v1271 = vsel %vm445, %v1268, %v1270
      %v1272 = vsel %vm445, %v1270, %v1268
      %v1273 = vmul.f32 %v1272, %v454
      %v1274 = vmul.f32 %v1271, %v458
      %1275 = vrot.lane.b32.xlu0 %v1256, 15
      %v1276 = vpop.permute.xlu0 %1275
      %1277 = vrot.lane.b32.xlu0 %v1257, 15
      %v1278 = vpop.permute.xlu0 %1277
      %v1279 = vsel %vm467, %v1276, %v1278
      %v1280 = vsel %vm467, %v1278, %v1276
      %v1281 = vmul.f32 %v1280, %v476
      %v1282 = vmul.f32 %v1279, %v480
      %1283 = vrot.lane.b32.xlu0 %v1256, 1
      %v1284 = vpop.permute.xlu0 %1283
      %1285 = vrot.lane.b32.xlu0 %v1257, 1
      %v1286 = vpop.permute.xlu0 %1285
      %v1287 = vsel %vm489, %v1284, %v1286
      %v1288 = vsel %vm489, %v1286, %v1284
      %v1289 = vmul.f32 %v1288, %v498
      %v1290 = vmul.f32 %v1287, %v502
      %1291 = vrot.lane.b32.xlu0 %v1256, 127
      %v1292 = vpop.permute.xlu0 %1291
      %1293 = vrot.lane.b32.xlu0 %v1257, 127
      %v1294 = vpop.permute.xlu0 %1293
      %v1295 = vsel %vm511, %v1292, %v1294
      %v1296 = vsel %vm511, %v1294, %v1292
      %v1297 = vmul.f32 %v1295, %v520
      %v1298 = vmul.f32 %v1296, %v524
      %1299 = vrot.lane.b32.xlu0 %v1256, 113
      %v1300 = vpop.permute.xlu0 %1299
      %1301 = vrot.lane.b32.xlu0 %v1257, 113
      %v1302 = vpop.permute.xlu0 %1301
      %v1303 = vsel %vm533, %v1300, %v1302
      %v1304 = vsel %vm533, %v1302, %v1300
      %v1305 = vmul.f32 %v1303, %v542
      %v1306 = vmul.f32 %v1304, %v546
      %1307 = vrot.lane.b32.xlu0 %v1256, 112
      %v1308 = vpop.permute.xlu0 %1307
      %1309 = vrot.lane.b32.xlu0 %v1257, 112
      %v1310 = vpop.permute.xlu0 %1309
      %v1311 = vsel %vm555, %v1308, %v1310
      %v1312 = vsel %vm555, %v1310, %v1308
      %v1313 = vmul.f32 %v1311, %v564
      %v1314 = vmul.f32 %v1312, %v568
      %1315 = vrot.lane.b32.xlu0 %v1256, 111
      %v1316 = vpop.permute.xlu0 %1315
      %1317 = vrot.lane.b32.xlu0 %v1257, 111
      %v1318 = vpop.permute.xlu0 %1317
      %v1319 = vsel %vm577, %v1316, %v1318
      %v1320 = vsel %vm577, %v1318, %v1316
      %v1321 = vmul.f32 %v1319, %v586
      %v1322 = vmul.f32 %v1320, %v590
      %v1323 = vpack.c.bf16 %v1273, %v1265
      %v1324 = vpack.c.bf16 %v1274, %v1266
      %v1325 = vpack.c.bf16 %v1289, %v1281
      %v1326 = vpack.c.bf16 %v1290, %v1282
      %v1327 = vpack.c.bf16 %v1297, %v1256
      %v1328 = vpack.c.bf16 %v1298, %v1257
      %v1329 = vpack.c.bf16 %v1313, %v1305
      %v1330 = vpack.c.bf16 %v1314, %v1306
      %v1331 = vpack.c.bf16 %v1321, %v1321
      %v1332 = vpack.c.bf16 %v1322, %v1322
      %v1333 = vld [vmem:[#allocation2] sm:$0x1]
      %1335 = vset.pattern.permute.xlu0 0
      %1336 = vperm.xlu0 %1335, %v1333
      %v1337 = vpop.permute.xlu0 %1336
      %v1339 = vlaneseq
      %v1340 = vshrl.u32 %v1339, 7
      %v1341 = vsub.s32 0, %v1340
      %v1342 = vrot.slane %v1337, %v1341
      %v1344 = vsel %vm611, %v1258, 0
      %v1347 = vsel %vm615, %v1331, 0
      %v1350 = vsel %vm615, %v1332, 0
      %1352 = vmatprep.subr.bf16.mxu0 %v1324
      %1353 = vmatpush1.bf16.msra.mxu0 %v1323
      %1354 = vmatprep.subr.bf16.mxu0 %v1326
      %1355 = vmatpush1.bf16.msra.mxu0 %v1325
      %1356 = vmatprep.subr.bf16.mxu0 %v1328
      %1357 = vmatpush1.bf16.msra.mxu0 %v1327
      %1358 = vmatprep.subr.bf16.mxu0 %v1330
      %1359 = vmatpush1.bf16.msra.mxu0 %v1329
      %1360 = vmatprep.subr.bf16.mxu0 %v1350
      %1361 = vmatpush1.bf16.msra.mxu0 %v1347
      %1362 = vmatprep.subr.bf16.mxu0 0
      %1363 = vmatpush1.bf16.msra.mxu0 0
      %1364 = vmatprep.subr.bf16.mxu0 0
      %1365 = vmatpush1.bf16.msra.mxu0 0
      %1366 = vmatprep.subr.bf16.mxu0 0
      %1367 = vmatpush1.bf16.msra.mxu0 0
      %1368 = vmatprep.subr.bf16.mxu0 0
      %1369 = vmatpush1.bf16.msra.mxu0 0
      %1370 = vmatprep.subr.bf16.mxu0 0
      %1371 = vmatpush1.bf16.msra.mxu0 0
      %1372 = vmatprep.subr.bf16.mxu0 0
      %1373 = vmatpush1.bf16.msra.mxu0 0
      %1374 = vmatprep.subr.bf16.mxu0 0
      %1375 = vmatpush1.bf16.msra.mxu0 0
      %1376 = vmatprep.subr.bf16.mxu0 0
      %1377 = vmatpush1.bf16.msra.mxu0 0
      %1378 = vmatprep.subr.bf16.mxu0 0
      %1379 = vmatpush1.bf16.msra.mxu0 0
      %1380 = vmatprep.subr.bf16.mxu0 0
      %1381 = vmatpush1.bf16.msra.mxu0 0
      %1382 = vmatprep.subr.bf16.mxu0 0
      %1383 = vmatpush1.bf16.msra.mxu0 0
      %1384 = vmatprep.mubr.bf16.mxu0 0
      %1385 = vmatmul.mubr.bf16.gmra.mrb[0].mxu0 %v1344
      %v1386 = vpop.f32.mrb[0].mxu0
      %v1387 = vadd.f32 %v1342, %v1386
      %v1388 = vpop.f32.mrb[0].mxu0
      %v1389 = vadd.f32 %v1342, %v1388
      %v1390 = vpop.f32.mrb[0].mxu0
      %v1391 = vpop.f32.mrb[0].mxu0
      %1392 = vdwg.mxu0
      %v1393 = vmax.f32 %v1387, 0.0
      %v1394 = vmax.f32 %v1389, 0.0
      %v1397 = vcombine.low %v1393, %v1394
      %v1399 = vunpack.c.l.s4 1966171168
      %v1400 = vunpack.c.0.s8 %v1399
      %v1401 = vlaneseq
      %v1402 = vshrl.u32 %v1401, 7
      %v1403 = vsub.s32 %v1400, %v1402
      %v1404 = vrot.slane %v1397, %v1403
      %v1406 = vunpack.c.l.s4 1966171168
      %v1407 = vunpack.c.0.s8 %v1406
      %v1408 = vlaneseq
      %v1409 = vshrl.u32 %v1408, 7
      %v1410 = vsub.s32 %v1407, %v1409
      %v1411 = vrot.slane %v1404, %v1410
      %v1413 = vlaneseq
      %vm1414 = vcmp.ge.s32.totalorder %v1413, 0
      %vm1415 = vcmp.lt.s32.totalorder %v1413, 256
      %vm1416 = vmand %vm1414, %vm1415
      %1417 = vst.msk [vmem:[%s413] sm:$0x3] %vm1416, %v1411
      %p1418 = scmp.lt.s32.totalorder %s25, 1
      %s1419 = scalar_select %p1418, %s25, 1
      %s1420 = smul.addr %s1419, 2
      %s1421 = scalar_lea.vmem %s12, %s1420
      // Predicated region
      $region69: #{ness_detector_forward.1} parent=67 // pred_check
        %p1422 = pneg %p300
      $region70: #{ness_detector_forward.1} parent=67 // pred_check_branch
        %1424 = sbr.rel (%p1422) target = $region72
      $region71: #{ness_detector_forward.1} parent=67 // pred_region
        _
      $region72: #{ness_detector_forward.1} parent=67 // pred_fallthru
        _
    $region68: #{ness_detector_forward.1} parent=5 // pred_fallthru
      _
    %p1425 = scmp.le.s32.totalorder 2, %s20
    // Predicated region
    $region73: #{ness_detector_forward.1} parent=5 // pred_check
      %p1426 = pneg %p1425
    $region74: #{ness_detector_forward.1} parent=5 // pred_check_branch
      %1428 = sbr.rel (%p1426) target = $region76
    $region75: #{ness_detector_forward.1} parent=5 // pred_region
      %s1429 = ssub.s32 %s20, 2
      // Predicated region
      $region77: #{ness_detector_forward.1} parent=75 // pred_check
        %p1430 = pneg %p306
      $region78: #{ness_detector_forward.1} parent=75 // pred_check_branch
        %1432 = sbr.rel (%p1430) target = $region80
      $region79: #{ness_detector_forward.1} parent=75 // pred_region
        %p1433 = scmp.lt.s32.totalorder %s26, 1
        %s1434 = scalar_select %p1433, %s26, 1
        %s1435 = smul.addr %s1434, 2
        %s1436 = scalar_lea.vmem %s12, %s1435
      $region80: #{ness_detector_forward.1} parent=75 // pred_fallthru
        _
    $region76: #{ness_detector_forward.1} parent=5 // pred_fallthru
      _
  $region6: #{ness_detector_forward.1} parent=0 // loop_footer
    %s24 = sadd.s32 1, %s20
  $region7: #{ness_detector_forward.1} parent=0 // loop_footer_branch
    %19 = sbr.rel target = $region3
  $region8: #{ness_detector_forward.1} parent=0 // loop_exit
    _

</llo_original>
